<compile_context>
chip_gen: v5e
topology: v5e:2x2
jax: 0.10.0
libtpu: 0.0.40
codegen_flags: <defaults>
</compile_context>

<pallas_src>
import functools

import jax
import jax.numpy as jnp
from jax.experimental import pallas as pl
from jax.experimental.pallas import tpu as pltpu


def attention_pool_kernel(x_ref, posk_ref, posv_ref, qb_ref, k0_ref, v0_ref,
                          hm_ref, hmt_ref, wq_ref, wk_ref, wv_ref, wc_ref,
                          bc_ref, o_ref, *, num_heads):
    bt, hw, c = x_ref.shape
    cd = x_ref.dtype                                   # matmul operand dtype

    xf = x_ref[...]                                    # (bt, hw, c)
    x2d = xf.reshape(bt * hw, c)                       # big-M MXU operand

    # Token-row K/V projections (no bias here -- biases live exactly once in
    # the precomputed positional terms added below).
    kx = jnp.dot(x2d, wk_ref[...],
                 preferred_element_type=jnp.float32).reshape(bt, hw, c)
    vx = jnp.dot(x2d, wv_ref[...],
                 preferred_element_type=jnp.float32).reshape(bt, hw, c)

    k_tok = kx + posk_ref[...][None]                   # + (pos[1:] @ Wk + bk)
    v_tok = vx + posv_ref[...][None]

    # cls (mean) token rows by linearity: mean(x @ W) == mean(x) @ W.
    k_cls = jnp.mean(kx, axis=1, keepdims=True) + k0_ref[...][None]   # (bt,1,c)
    v_cls = jnp.mean(vx, axis=1, keepdims=True) + v0_ref[...][None]

    # Query uses only the cls token.  Wq and qb already carry the 1/sqrt(hd)
    # scale; qb = (pos[0] @ Wq + bq) * scale.
    mean_x = jnp.mean(xf.astype(jnp.float32), axis=1)                 # (bt, c)
    q = jnp.dot(mean_x.astype(cd), wq_ref[...],
                preferred_element_type=jnp.float32) + qb_ref[...]     # (bt, c)

    # Per-head scores via the constant 0/1 head-membership matrix hm (c, H):
    #   s[b, t, h] = sum_{d in head h} q[b, d] * k[b, t, d]
    hm = hm_ref[...]                                                  # (c, H)
    p_tok = (k_tok * q[:, None, :]).reshape(bt * hw, c)
    s_tok = jnp.dot(p_tok, hm,
                    preferred_element_type=jnp.float32).reshape(bt, hw, num_heads)
    p_cls = (k_cls * q[:, None, :]).reshape(bt, c)
    s_cls = jnp.dot(p_cls, hm,
                    preferred_element_type=jnp.float32).reshape(bt, 1, num_heads)

    # Numerically stable softmax over the (HW + 1) rows, without concatenating.
    m = jnp.maximum(jnp.max(s_tok, axis=1, keepdims=True), s_cls)     # (bt,1,H)
    e_tok = jnp.exp(s_tok - m)                                        # (bt,hw,H)
    e_cls = jnp.exp(s_cls - m)                                        # (bt,1,H)
    denom = jnp.sum(e_tok, axis=1, keepdims=True) + e_cls
    inv = pl.reciprocal(denom, approx=True)                           # EUP slot
    w_tok = e_tok * inv
    w_cls = e_cls * inv

    # Broadcast per-head weights back to channel width with hm^T (H, c) and
    # take the weighted sum of V over all rows.
    hmt = hmt_ref[...]
    wt_full = jnp.dot(w_tok.reshape(bt * hw, num_heads), hmt,
                      preferred_element_type=jnp.float32).reshape(bt, hw, c)
    wcls_full = jnp.dot(w_cls.reshape(bt, num_heads), hmt,
                        preferred_element_type=jnp.float32)           # (bt, c)
    attn = jnp.sum(wt_full * v_tok, axis=1) + wcls_full * v_cls[:, 0, :]

    # Output projection -> lane-dense (bt, d_out) store.
    out = jnp.dot(attn.astype(cd), wc_ref[...],
                  preferred_element_type=jnp.float32) + bc_ref[...]
    o_ref[...] = out.astype(o_ref.dtype)


def attention_pool2d(x_nchw, params, num_heads, *, b_tile=8,
                     compute_dtype=jnp.bfloat16):
    n, c, h, w = x_nchw.shape
    hw = h * w
    d_out = params["wc"].shape[1]
    hd = c // num_heads
    scale = hd ** -0.5

    # Batch tile that divides N (keep grid >= 2 so both v7x TCs get work).
    b_tile = max(1, min(b_tile, n))
    while n % b_tile:
        b_tile -= 1

    # Glue: NCHW -> (N, HW, C) token layout for lane-dense channel access.
    # TODO(synk): accept (N, C, HW) blocks + in-kernel transpose to save this
    # extra HBM round trip of the activations.
    x_flat = jnp.transpose(x_nchw.reshape(n, c, hw), (0, 2, 1)).astype(compute_dtype)

    f32 = jnp.float32
    pos = params["pos"].astype(f32)
    wq, bq = params["wq"].astype(f32), params["bq"].astype(f32)
    wk, bk = params["wk"].astype(f32), params["bk"].astype(f32)
    wv, bv = params["wv"].astype(f32), params["bv"].astype(f32)
    wc, bc = params["wc"].astype(f32), params["bc"].astype(f32)

    # Hoist every batch-invariant term out of the kernel.
    pos_k = pos @ wk + bk                       # (L, C): per-row K offsets (incl. bk)
    pos_v = pos @ wv + bv
    posk_tok, k0 = pos_k[1:], pos_k[0:1]        # (HW, C), (1, C)
    posv_tok, v0 = pos_v[1:], pos_v[0:1]
    qb = (pos[0:1] @ wq + bq) * scale           # (1, C), includes the q scale
    wq_s = (wq * scale).astype(compute_dtype)
    wk_c = wk.astype(compute_dtype)
    wv_c = wv.astype(compute_dtype)
    wc_c = wc.astype(compute_dtype)

    # 0/1 head-membership matrix and its transpose: per-head segment sums and
    # weight broadcasts become MXU matmuls instead of lane-sliced loops.
    hm = (jnp.arange(c)[:, None] // hd == jnp.arange(num_heads)[None, :]).astype(f32)
    hmt = jnp.transpose(hm)

    kernel = functools.partial(attention_pool_kernel, num_heads=num_heads)
    const = lambda b: (0, 0)
    out = pl.pallas_call(
        kernel,
        out_shape=jax.ShapeDtypeStruct((n, d_out), jnp.float32),
        grid_spec=pltpu.PrefetchScalarGridSpec(
            num_scalar_prefetch=0,
            grid=(n // b_tile,),
            # TODO(synk): at CLIP scale on v7x (64 MiB VMEM), single-buffer the
            # constant weight specs (pipeline_mode=pl.Buffered(1)) and/or add a
            # C-reduction grid axis so the resident weight set fits.
            in_specs=[
                pl.BlockSpec((b_tile, hw, c), lambda b: (b, 0, 0)),  # x tile
                pl.BlockSpec((hw, c), const),                        # pos_k[1:]
                pl.BlockSpec((hw, c), const),                        # pos_v[1:]
                pl.BlockSpec((1, c), const),                         # q bias (scaled)
                pl.BlockSpec((1, c), const),                         # pos_k[0]
                pl.BlockSpec((1, c), const),                         # pos_v[0]
                pl.BlockSpec((c, num_heads), const),                 # head map
                pl.BlockSpec((num_heads, c), const),                 # head map^T
                pl.BlockSpec((c, c), const),                         # Wq * scale
                pl.BlockSpec((c, c), const),                         # Wk
                pl.BlockSpec((c, c), const),                         # Wv
                pl.BlockSpec((c, d_out), const),                     # Wc
                pl.BlockSpec((1, d_out), const),                     # bc
            ],
            out_specs=pl.BlockSpec((b_tile, d_out), lambda b: (b, 0)),
        ),
        compiler_params=pltpu.CompilerParams(
            dimension_semantics=("parallel",),
            # Weights/pos stay resident across grid steps; raise the scoped
            # VMEM cap above the 16/32 MiB defaults (stays < v7x's 64 MiB).
            vmem_limit_bytes=48 * 1024 * 1024,
        ),
    )(x_flat, posk_tok, posv_tok, qb, k0, v0, hm, hmt,
      wq_s, wk_c, wv_c, wc_c, bc)
    return out                                   # (N, D_out)


def reference(x_nchw, params, num_heads):
    """Pure-JAX re-implementation of the PyTorch forward, for validation."""
    n, c, h, w = x_nchw.shape
    x = jnp.transpose(x_nchw.reshape(n, c, h * w), (2, 0, 1))   # (HW, N, C)
    x = jnp.concatenate([x.mean(axis=0, keepdims=True), x], axis=0)
    x = x + params["pos"][:, None, :]
    hd = c // num_heads
    scale = hd ** -0.5
    q = (x[:1] @ params["wq"] + params["bq"]) * scale           # (1, N, C)
    k = x @ params["wk"] + params["bk"]                         # (L, N, C)
    v = x @ params["wv"] + params["bv"]
    L = x.shape[0]
    qh = q.reshape(1, n, num_heads, hd)
    kh = k.reshape(L, n, num_heads, hd)
    vh = v.reshape(L, n, num_heads, hd)
    s = jnp.einsum("qnhd,lnhd->nhql", qh, kh)
    wgt = jax.nn.softmax(s, axis=-1)
    o = jnp.einsum("nhql,lnhd->qnhd", wgt, vh).reshape(1, n, c)
    return (o @ params["wc"] + params["bc"])[0]                 # (N, D_out)


if __name__ == "__main__":
    # Small shapes consistent with the module: spatial_dim=4 (HW=16),
    # embed_dim=64, num_heads=4 (head_dim=16), output_dim=128, batch=16.
    # b_tile=8 -> B_TILE*HW = 128 MXU rows per step and a 2-step grid.
    batch, embed_dim, spatial_dim, num_heads = 16, 64, 4, 4
    output_dim = 128
    seq_len = spatial_dim * spatial_dim + 1

    key = jax.random.PRNGKey(0)
    ks = jax.random.split(key, 11)
    std = embed_dim ** (-0.5)
    params = {
        "pos": jax.random.normal(ks[0], (seq_len, embed_dim), jnp.float32) * std,
        "wq": jax.random.normal(ks[1], (embed_dim, embed_dim), jnp.float32) * std,
        "bq": jax.random.uniform(ks[2], (1, embed_dim), jnp.float32, -std, std),
        "wk": jax.random.normal(ks[3], (embed_dim, embed_dim), jnp.float32) * std,
        "bk": jax.random.uniform(ks[4], (1, embed_dim), jnp.float32, -std, std),
        "wv": jax.random.normal(ks[5], (embed_dim, embed_dim), jnp.float32) * std,
        "bv": jax.random.uniform(ks[6], (1, embed_dim), jnp.float32, -std, std),
        "wc": jax.random.normal(ks[7], (embed_dim, output_dim), jnp.float32) * std,
        "bc": jax.random.uniform(ks[8], (1, output_dim), jnp.float32, -std, std),
    }
    x = jax.random.normal(ks[9], (batch, embed_dim, spatial_dim, spatial_dim),
                          jnp.float32)

    ref = reference(x, params, num_heads)

    # f32 matmul operands: tight check against the pure-JAX reference
    # (tolerance leaves room for the approximate EUP reciprocal).
    out_f32 = attention_pool2d(x, params, num_heads, b_tile=8,
                               compute_dtype=jnp.float32)
    jax.block_until_ready(out_f32)
    assert out_f32.shape == (batch, output_dim), out_f32.shape
    assert jnp.allclose(out_f32, ref, atol=5e-3, rtol=5e-3), \
        f"f32 max err {jnp.max(jnp.abs(out_f32 - ref))}"

    # bf16 matmul operands (production config): looser tolerance.
    out_bf16 = attention_pool2d(x, params, num_heads, b_tile=8,
                                compute_dtype=jnp.bfloat16)
    jax.block_until_ready(out_bf16)
    assert out_bf16.shape == (batch, output_dim), out_bf16.shape
    assert jnp.allclose(out_bf16, ref, atol=6e-2, rtol=6e-2), \
        f"bf16 max err {jnp.max(jnp.abs(out_bf16 - ref))}"

    print("KERNEL_OK")
</pallas_src>

<mosaic_0001>
module attributes {stable_mosaic.version = 11 : i64} {
  func.func @attention_pool_kernel(%arg0: i32, %arg1: memref<8x16x64xf32, #tpu.memory_space<vmem>>, %arg2: memref<16x64xf32, #tpu.memory_space<vmem>>, %arg3: memref<16x64xf32, #tpu.memory_space<vmem>>, %arg4: memref<1x64xf32, #tpu.memory_space<vmem>>, %arg5: memref<1x64xf32, #tpu.memory_space<vmem>>, %arg6: memref<1x64xf32, #tpu.memory_space<vmem>>, %arg7: memref<64x4xf32, #tpu.memory_space<vmem>>, %arg8: memref<4x64xf32, #tpu.memory_space<vmem>>, %arg9: memref<64x64xf32, #tpu.memory_space<vmem>>, %arg10: memref<64x64xf32, #tpu.memory_space<vmem>>, %arg11: memref<64x64xf32, #tpu.memory_space<vmem>>, %arg12: memref<64x128xf32, #tpu.memory_space<vmem>>, %arg13: memref<1x128xf32, #tpu.memory_space<vmem>>, %arg14: memref<8x128xf32, #tpu.memory_space<vmem>>) attributes {dimension_semantics = [#tpu.dimension_semantics<parallel>], iteration_bounds = array<i64: 2>, scalar_prefetch = 0 : i64, scratch_operands = 0 : i64, tpu.core_type = #tpu.core_type<tc>, window_params = [{transform_indices = @transform_0, window_bounds = array<i64: 8, 16, 64>}, {pipeline_mode = #tpu.pipeline_mode<synchronous>, transform_indices = @transform_1, window_bounds = array<i64: 16, 64>}, {pipeline_mode = #tpu.pipeline_mode<synchronous>, transform_indices = @transform_2, window_bounds = array<i64: 16, 64>}, {pipeline_mode = #tpu.pipeline_mode<synchronous>, transform_indices = @transform_3, window_bounds = array<i64: 1, 64>}, {pipeline_mode = #tpu.pipeline_mode<synchronous>, transform_indices = @transform_4, window_bounds = array<i64: 1, 64>}, {pipeline_mode = #tpu.pipeline_mode<synchronous>, transform_indices = @transform_5, window_bounds = array<i64: 1, 64>}, {pipeline_mode = #tpu.pipeline_mode<synchronous>, transform_indices = @transform_6, window_bounds = array<i64: 64, 4>}, {pipeline_mode = #tpu.pipeline_mode<synchronous>, transform_indices = @transform_7, window_bounds = array<i64: 4, 64>}, {pipeline_mode = #tpu.pipeline_mode<synchronous>, transform_indices = @transform_8, window_bounds = array<i64: 64, 64>}, {pipeline_mode = #tpu.pipeline_mode<synchronous>, transform_indices = @transform_9, window_bounds = array<i64: 64, 64>}, {pipeline_mode = #tpu.pipeline_mode<synchronous>, transform_indices = @transform_10, window_bounds = array<i64: 64, 64>}, {pipeline_mode = #tpu.pipeline_mode<synchronous>, transform_indices = @transform_11, window_bounds = array<i64: 64, 128>}, {pipeline_mode = #tpu.pipeline_mode<synchronous>, transform_indices = @transform_12, window_bounds = array<i64: 1, 128>}, {transform_indices = @transform_13, window_bounds = array<i64: 8, 128>}]} {
    %c0 = arith.constant 0 : index
    %c0_0 = arith.constant 0 : index
    %c0_1 = arith.constant 0 : index
    %0 = vector.load %arg1[%c0, %c0_0, %c0_1] : memref<8x16x64xf32, #tpu.memory_space<vmem>>, vector<8x16x64xf32>
    %1 = vector.shape_cast %0 : vector<8x16x64xf32> to vector<128x64xf32>
    %c0_2 = arith.constant 0 : index
    %c0_3 = arith.constant 0 : index
    %2 = vector.load %arg10[%c0_2, %c0_3] : memref<64x64xf32, #tpu.memory_space<vmem>>, vector<64x64xf32>
    %cst = arith.constant dense<0.000000e+00> : vector<128x64xf32>
    %3 = tpu.matmul %1, %2, %cst {dimension_numbers = #tpu.dot_dimension_numbers<[1], [0], [0], [1], [0, 0, 1, 1], [], []>} : vector<128x64xf32>, vector<64x64xf32>, vector<128x64xf32> -> vector<128x64xf32>
    %4 = vector.shape_cast %3 : vector<128x64xf32> to vector<8x16x64xf32>
    %c0_4 = arith.constant 0 : index
    %c0_5 = arith.constant 0 : index
    %5 = vector.load %arg11[%c0_4, %c0_5] : memref<64x64xf32, #tpu.memory_space<vmem>>, vector<64x64xf32>
    %cst_6 = arith.constant dense<0.000000e+00> : vector<128x64xf32>
    %6 = tpu.matmul %1, %5, %cst_6 {dimension_numbers = #tpu.dot_dimension_numbers<[1], [0], [0], [1], [0, 0, 1, 1], [], []>} : vector<128x64xf32>, vector<64x64xf32>, vector<128x64xf32> -> vector<128x64xf32>
    %7 = vector.shape_cast %6 : vector<128x64xf32> to vector<8x16x64xf32>
    %c0_7 = arith.constant 0 : index
    %c0_8 = arith.constant 0 : index
    %8 = vector.load %arg2[%c0_7, %c0_8] : memref<16x64xf32, #tpu.memory_space<vmem>>, vector<16x64xf32>
    %9 = vector.shape_cast %8 : vector<16x64xf32> to vector<1x16x64xf32>
    %10 = vector.broadcast %9 : vector<1x16x64xf32> to vector<8x16x64xf32>
    %11 = arith.addf %4, %10 : vector<8x16x64xf32>
    %c0_9 = arith.constant 0 : index
    %c0_10 = arith.constant 0 : index
    %12 = vector.load %arg3[%c0_9, %c0_10] : memref<16x64xf32, #tpu.memory_space<vmem>>, vector<16x64xf32>
    %13 = vector.shape_cast %12 : vector<16x64xf32> to vector<1x16x64xf32>
    %14 = vector.broadcast %13 : vector<1x16x64xf32> to vector<8x16x64xf32>
    %15 = arith.addf %7, %14 : vector<8x16x64xf32>
    %cst_11 = arith.constant dense<0.000000e+00> : vector<8x64xf32>
    %16 = vector.multi_reduction <add>, %4, %cst_11 [1] : vector<8x16x64xf32> to vector<8x64xf32>
    %17 = vector.shape_cast %16 : vector<8x64xf32> to vector<8x1x64xf32>
    %cst_12 = arith.constant 1.600000e+01 : f32
    %18 = vector.broadcast %cst_12 : f32 to vector<8x1x64xf32>
    %19 = arith.divf %17, %18 : vector<8x1x64xf32>
    %c0_13 = arith.constant 0 : index
    %c0_14 = arith.constant 0 : index
    %20 = vector.load %arg5[%c0_13, %c0_14] : memref<1x64xf32, #tpu.memory_space<vmem>>, vector<1x64xf32>
    %21 = vector.shape_cast %20 : vector<1x64xf32> to vector<1x1x64xf32>
    %22 = vector.broadcast %21 : vector<1x1x64xf32> to vector<8x1x64xf32>
    %23 = arith.addf %19, %22 : vector<8x1x64xf32>
    %cst_15 = arith.constant dense<0.000000e+00> : vector<8x64xf32>
    %24 = vector.multi_reduction <add>, %7, %cst_15 [1] : vector<8x16x64xf32> to vector<8x64xf32>
    %25 = vector.shape_cast %24 : vector<8x64xf32> to vector<8x1x64xf32>
    %cst_16 = arith.constant 1.600000e+01 : f32
    %26 = vector.broadcast %cst_16 : f32 to vector<8x1x64xf32>
    %27 = arith.divf %25, %26 : vector<8x1x64xf32>
    %c0_17 = arith.constant 0 : index
    %c0_18 = arith.constant 0 : index
    %28 = vector.load %arg6[%c0_17, %c0_18] : memref<1x64xf32, #tpu.memory_space<vmem>>, vector<1x64xf32>
    %29 = vector.shape_cast %28 : vector<1x64xf32> to vector<1x1x64xf32>
    %30 = vector.broadcast %29 : vector<1x1x64xf32> to vector<8x1x64xf32>
    %31 = arith.addf %27, %30 : vector<8x1x64xf32>
    %cst_19 = arith.constant dense<0.000000e+00> : vector<8x64xf32>
    %32 = vector.multi_reduction <add>, %0, %cst_19 [1] : vector<8x16x64xf32> to vector<8x64xf32>
    %cst_20 = arith.constant 1.600000e+01 : f32
    %33 = vector.broadcast %cst_20 : f32 to vector<8x64xf32>
    %34 = arith.divf %32, %33 : vector<8x64xf32>
    %c0_21 = arith.constant 0 : index
    %c0_22 = arith.constant 0 : index
    %35 = vector.load %arg9[%c0_21, %c0_22] : memref<64x64xf32, #tpu.memory_space<vmem>>, vector<64x64xf32>
    %cst_23 = arith.constant dense<0.000000e+00> : vector<8x64xf32>
    %36 = tpu.matmul %34, %35, %cst_23 {dimension_numbers = #tpu.dot_dimension_numbers<[1], [0], [0], [1], [0, 0, 1, 1], [], []>} : vector<8x64xf32>, vector<64x64xf32>, vector<8x64xf32> -> vector<8x64xf32>
    %c0_24 = arith.constant 0 : index
    %c0_25 = arith.constant 0 : index
    %37 = vector.load %arg4[%c0_24, %c0_25] : memref<1x64xf32, #tpu.memory_space<vmem>>, vector<1x64xf32>
    %38 = vector.broadcast %37 : vector<1x64xf32> to vector<8x64xf32>
    %39 = arith.addf %36, %38 : vector<8x64xf32>
    %c0_26 = arith.constant 0 : index
    %c0_27 = arith.constant 0 : index
    %40 = vector.load %arg7[%c0_26, %c0_27] : memref<64x4xf32, #tpu.memory_space<vmem>>, vector<64x4xf32>
    %41 = vector.shape_cast %39 : vector<8x64xf32> to vector<8x1x64xf32>
    %42 = vector.broadcast %41 : vector<8x1x64xf32> to vector<8x16x64xf32>
    %43 = arith.mulf %11, %42 : vector<8x16x64xf32>
    %44 = vector.shape_cast %43 : vector<8x16x64xf32> to vector<128x64xf32>
    %cst_28 = arith.constant dense<0.000000e+00> : vector<128x4xf32>
    %45 = tpu.matmul %44, %40, %cst_28 {dimension_numbers = #tpu.dot_dimension_numbers<[1], [0], [0], [1], [0, 0, 1, 1], [], []>} : vector<128x64xf32>, vector<64x4xf32>, vector<128x4xf32> -> vector<128x4xf32>
    %46 = vector.shape_cast %45 : vector<128x4xf32> to vector<8x16x4xf32>
    %47 = vector.shape_cast %39 : vector<8x64xf32> to vector<8x1x64xf32>
    %48 = arith.mulf %23, %47 : vector<8x1x64xf32>
    %49 = vector.shape_cast %48 : vector<8x1x64xf32> to vector<8x64xf32>
    %cst_29 = arith.constant dense<0.000000e+00> : vector<8x4xf32>
    %50 = tpu.matmul %49, %40, %cst_29 {dimension_numbers = #tpu.dot_dimension_numbers<[1], [0], [0], [1], [0, 0, 1, 1], [], []>} : vector<8x64xf32>, vector<64x4xf32>, vector<8x4xf32> -> vector<8x4xf32>
    %51 = vector.shape_cast %50 : vector<8x4xf32> to vector<8x1x4xf32>
    %cst_30 = arith.constant dense<0xFF800000> : vector<8x4xf32>
    %52 = vector.multi_reduction <maximumf>, %46, %cst_30 [1] : vector<8x16x4xf32> to vector<8x4xf32>
    %53 = vector.shape_cast %52 : vector<8x4xf32> to vector<8x1x4xf32>
    %54 = arith.maximumf %53, %51 : vector<8x1x4xf32>
    %55 = vector.broadcast %54 : vector<8x1x4xf32> to vector<8x16x4xf32>
    %56 = arith.subf %46, %55 : vector<8x16x4xf32>
    %57 = math.exp %56 : vector<8x16x4xf32>
    %58 = arith.subf %51, %54 : vector<8x1x4xf32>
    %59 = math.exp %58 : vector<8x1x4xf32>
    %cst_31 = arith.constant dense<0.000000e+00> : vector<8x4xf32>
    %60 = vector.multi_reduction <add>, %57, %cst_31 [1] : vector<8x16x4xf32> to vector<8x4xf32>
    %61 = vector.shape_cast %60 : vector<8x4xf32> to vector<8x1x4xf32>
    %62 = arith.addf %61, %59 : vector<8x1x4xf32>
    %63 = tpu.reciprocal %62 {approx = true} : vector<8x1x4xf32> -> vector<8x1x4xf32>
    %64 = vector.broadcast %63 : vector<8x1x4xf32> to vector<8x16x4xf32>
    %65 = arith.mulf %57, %64 : vector<8x16x4xf32>
    %66 = arith.mulf %59, %63 : vector<8x1x4xf32>
    %c0_32 = arith.constant 0 : index
    %c0_33 = arith.constant 0 : index
    %67 = vector.load %arg8[%c0_32, %c0_33] : memref<4x64xf32, #tpu.memory_space<vmem>>, vector<4x64xf32>
    %68 = vector.shape_cast %65 : vector<8x16x4xf32> to vector<128x4xf32>
    %cst_34 = arith.constant dense<0.000000e+00> : vector<128x64xf32>
    %69 = tpu.matmul %68, %67, %cst_34 {dimension_numbers = #tpu.dot_dimension_numbers<[1], [0], [0], [1], [0, 0, 1, 1], [], []>} : vector<128x4xf32>, vector<4x64xf32>, vector<128x64xf32> -> vector<128x64xf32>
    %70 = vector.shape_cast %69 : vector<128x64xf32> to vector<8x16x64xf32>
    %71 = vector.shape_cast %66 : vector<8x1x4xf32> to vector<8x4xf32>
    %cst_35 = arith.constant dense<0.000000e+00> : vector<8x64xf32>
    %72 = tpu.matmul %71, %67, %cst_35 {dimension_numbers = #tpu.dot_dimension_numbers<[1], [0], [0], [1], [0, 0, 1, 1], [], []>} : vector<8x4xf32>, vector<4x64xf32>, vector<8x64xf32> -> vector<8x64xf32>
    %73 = arith.mulf %70, %15 : vector<8x16x64xf32>
    %cst_36 = arith.constant dense<0.000000e+00> : vector<8x64xf32>
    %74 = vector.multi_reduction <add>, %73, %cst_36 [1] : vector<8x16x64xf32> to vector<8x64xf32>
    %75 = vector.shape_cast %31 : vector<8x1x64xf32> to vector<8x64xf32>
    %76 = arith.mulf %72, %75 : vector<8x64xf32>
    %77 = arith.addf %74, %76 : vector<8x64xf32>
    %c0_37 = arith.constant 0 : index
    %c0_38 = arith.constant 0 : index
    %78 = vector.load %arg12[%c0_37, %c0_38] : memref<64x128xf32, #tpu.memory_space<vmem>>, vector<64x128xf32>
    %cst_39 = arith.constant dense<0.000000e+00> : vector<8x128xf32>
    %79 = tpu.matmul %77, %78, %cst_39 {dimension_numbers = #tpu.dot_dimension_numbers<[1], [0], [0], [1], [0, 0, 1, 1], [], []>} : vector<8x64xf32>, vector<64x128xf32>, vector<8x128xf32> -> vector<8x128xf32>
    %c0_40 = arith.constant 0 : index
    %c0_41 = arith.constant 0 : index
    %80 = vector.load %arg13[%c0_40, %c0_41] : memref<1x128xf32, #tpu.memory_space<vmem>>, vector<1x128xf32>
    %81 = vector.broadcast %80 : vector<1x128xf32> to vector<8x128xf32>
    %82 = arith.addf %79, %81 : vector<8x128xf32>
    %c0_42 = arith.constant 0 : index
    %c0_43 = arith.constant 0 : index
    %83 = vector.load %arg14[%c0_42, %c0_43] : memref<8x128xf32, #tpu.memory_space<vmem>>, vector<8x128xf32>
    tpu.vector_store %arg14[%c0_42, %c0_43], %82 {strides = array<i32>} : memref<8x128xf32, #tpu.memory_space<vmem>>, vector<8x128xf32>,
    return
  }
  func.func @transform_0(%arg0: i32) -> (i32, i32, i32) {
    %c0_i32 = arith.constant 0 : i32
    %c0_i32_0 = arith.constant 0 : i32
    %c0_i32_1 = arith.constant 0 : i32
    return %arg0, %c0_i32, %c0_i32_0 : i32, i32, i32
  }
  func.func @transform_1(%arg0: i32) -> (i32, i32) {
    %c0_i32 = arith.constant 0 : i32
    %c0_i32_0 = arith.constant 0 : i32
    %c0_i32_1 = arith.constant 0 : i32
    return %c0_i32, %c0_i32_0 : i32, i32
  }
  func.func @transform_2(%arg0: i32) -> (i32, i32) {
    %c0_i32 = arith.constant 0 : i32
    %c0_i32_0 = arith.constant 0 : i32
    %c0_i32_1 = arith.constant 0 : i32
    return %c0_i32, %c0_i32_0 : i32, i32
  }
  func.func @transform_3(%arg0: i32) -> (i32, i32) {
    %c0_i32 = arith.constant 0 : i32
    %c0_i32_0 = arith.constant 0 : i32
    %c0_i32_1 = arith.constant 0 : i32
    return %c0_i32, %c0_i32_0 : i32, i32
  }
  func.func @transform_4(%arg0: i32) -> (i32, i32) {
    %c0_i32 = arith.constant 0 : i32
    %c0_i32_0 = arith.constant 0 : i32
    %c0_i32_1 = arith.constant 0 : i32
    return %c0_i32, %c0_i32_0 : i32, i32
  }
  func.func @transform_5(%arg0: i32) -> (i32, i32) {
    %c0_i32 = arith.constant 0 : i32
    %c0_i32_0 = arith.constant 0 : i32
    %c0_i32_1 = arith.constant 0 : i32
    return %c0_i32, %c0_i32_0 : i32, i32
  }
  func.func @transform_6(%arg0: i32) -> (i32, i32) {
    %c0_i32 = arith.constant 0 : i32
    %c0_i32_0 = arith.constant 0 : i32
    %c0_i32_1 = arith.constant 0 : i32
    return %c0_i32, %c0_i32_0 : i32, i32
  }
  func.func @transform_7(%arg0: i32) -> (i32, i32) {
    %c0_i32 = arith.constant 0 : i32
    %c0_i32_0 = arith.constant 0 : i32
    %c0_i32_1 = arith.constant 0 : i32
    return %c0_i32, %c0_i32_0 : i32, i32
  }
  func.func @transform_8(%arg0: i32) -> (i32, i32) {
    %c0_i32 = arith.constant 0 : i32
    %c0_i32_0 = arith.constant 0 : i32
    %c0_i32_1 = arith.constant 0 : i32
    return %c0_i32, %c0_i32_0 : i32, i32
  }
  func.func @transform_9(%arg0: i32) -> (i32, i32) {
    %c0_i32 = arith.constant 0 : i32
    %c0_i32_0 = arith.constant 0 : i32
    %c0_i32_1 = arith.constant 0 : i32
    return %c0_i32, %c0_i32_0 : i32, i32
  }
  func.func @transform_10(%arg0: i32) -> (i32, i32) {
    %c0_i32 = arith.constant 0 : i32
    %c0_i32_0 = arith.constant 0 : i32
    %c0_i32_1 = arith.constant 0 : i32
    return %c0_i32, %c0_i32_0 : i32, i32
  }
  func.func @transform_11(%arg0: i32) -> (i32, i32) {
    %c0_i32 = arith.constant 0 : i32
    %c0_i32_0 = arith.constant 0 : i32
    %c0_i32_1 = arith.constant 0 : i32
    return %c0_i32, %c0_i32_0 : i32, i32
  }
  func.func @transform_12(%arg0: i32) -> (i32, i32) {
    %c0_i32 = arith.constant 0 : i32
    %c0_i32_0 = arith.constant 0 : i32
    %c0_i32_1 = arith.constant 0 : i32
    return %c0_i32, %c0_i32_0 : i32, i32
  }
  func.func @transform_13(%arg0: i32) -> (i32, i32) {
    %c0_i32 = arith.constant 0 : i32
    %c0_i32_0 = arith.constant 0 : i32
    return %arg0, %c0_i32 : i32, i32
  }
}

</mosaic_0001>

<llo_original>
// kernel: tpu_custom_call.1
$region0: #{tpu_custom_call.1}
  #allocation0 [shape = 'u32[]', space=smem, size = 0x4, offset = 0x4, fixed_abs, tag = 'smem constant byte address 0x4 - core index']
  #allocation1 [shape = 'u32[72,128]{1,0:T(1,128)}', space=vmem, size = 0x9000, scoped, tag = 'internal scratch']
  %s0 = inlined_call_operand.hbm [shape: f32[16,16,64], index: 0, kind: input, shape index: {}]
  %s1 = inlined_call_operand.hbm [shape: f32[16,64], index: 1, kind: input, shape index: {}]
  %s2 = inlined_call_operand.hbm [shape: f32[16,64], index: 2, kind: input, shape index: {}]
  %s3 = inlined_call_operand.vmem [shape: f32[1,64], index: 3, kind: input, shape index: {}]
  %s4 = inlined_call_operand.hbm [shape: f32[1,64], index: 4, kind: input, shape index: {}]
  %s5 = inlined_call_operand.hbm [shape: f32[1,64], index: 5, kind: input, shape index: {}]
  %s6 = inlined_call_operand.vmem [shape: f32[64,4], index: 6, kind: input, shape index: {}]
  %s7 = inlined_call_operand.vmem [shape: f32[4,64], index: 7, kind: input, shape index: {}]
  %s8 = inlined_call_operand.vmem [shape: f32[64,64], index: 8, kind: input, shape index: {}]
  %s9 = inlined_call_operand.hbm [shape: f32[64,64], index: 9, kind: input, shape index: {}]
  %s10 = inlined_call_operand.hbm [shape: f32[64,64], index: 10, kind: input, shape index: {}]
  %s11 = inlined_call_operand.hbm [shape: f32[64,128], index: 11, kind: input, shape index: {}]
  %s12 = inlined_call_operand.vmem [shape: f32[1,128], index: 12, kind: input, shape index: {}]
  %s13 = inlined_call_operand.hbm [shape: f32[16,128], index: 13, kind: output, shape index: {}]
  %s14 = sld [smem:[#allocation0]]
  $region117: #{tpu_custom_call.1} parent=0
    _
  %s16 = ssub.s32 1, %s14
  %s17 = scalar_select 0, %s16, %s14
  $region1: #{tpu_custom_call.1} parent=0
    #allocation2 [shape = 'u8[131072]{0}', space=vmem, size = 0x20000, scoped, tag = 'input window, operand 0']
    #allocation3 [shape = 's32[2]{0}', space=sflag, size = 0x8, scoped, tag = 'scoped memory for tpu_custom_call.1']
    #allocation4 [shape = 's32[2]{0}', space=sflag, size = 0x8, scoped, tag = 'scoped memory for tpu_custom_call.1']
    #allocation5 [shape = 'u8[8192]{0}', space=vmem, size = 0x2000, scoped, tag = 'input window, operand 1, single buffered']
    #allocation6 [shape = 's32[1]{0}', space=sflag, size = 0x4, scoped, tag = 'scoped memory for tpu_custom_call.1']
    #allocation7 [shape = 'u8[8192]{0}', space=vmem, size = 0x2000, scoped, tag = 'input window, operand 2, single buffered']
    #allocation8 [shape = 'u8[512]{0}', space=vmem, size = 0x400, scoped, tag = 'input window, operand 4, single buffered']
    #allocation9 [shape = 's32[1]{0}', space=sflag, size = 0x4, scoped, tag = 'scoped memory for tpu_custom_call.1']
    #allocation10 [shape = 'u8[512]{0}', space=vmem, size = 0x400, scoped, tag = 'input window, operand 5, single buffered']
    #allocation11 [shape = 'u8[32768]{0}', space=vmem, size = 0x8000, scoped, tag = 'input window, operand 9, single buffered']
    #allocation12 [shape = 's32[1]{0}', space=sflag, size = 0x4, scoped, tag = 'scoped memory for tpu_custom_call.1']
    #allocation13 [shape = 'u8[32768]{0}', space=vmem, size = 0x8000, scoped, tag = 'input window, operand 10, single buffered']
    #allocation14 [shape = 'u8[32768]{0}', space=vmem, size = 0x8000, scoped, tag = 'input window, operand 11, single buffered']
    #allocation15 [shape = 's32[1]{0}', space=sflag, size = 0x4, scoped, tag = 'scoped memory for tpu_custom_call.1']
    #allocation16 [shape = 'u8[8192]{0}', space=vmem, size = 0x2000, scoped, tag = 'output window, operand 0']
    %18 = vsyncpa [#allocation3], 0
    %s19 = scalar_lea.sflag [#allocation3], 1
    %20 = vsyncpa %s19, 0
    %21 = vsyncpa [#allocation6], 0
    %22 = vsyncpa [#allocation9], 0
    %23 = vsyncpa [#allocation12], 0
    %24 = vsyncpa [#allocation15], 0
    %25 = vsyncpa [#allocation4], 0
    %s26 = scalar_lea.sflag [#allocation4], 1
    %27 = vsyncpa %s26, 0
    loop: start=0, step=1, limit=4
    $region2: #{tpu_custom_call.1} parent=1 // loop_pre_header
      _
    $region3: #{tpu_custom_call.1} parent=1 // loop_header
      %s29 = sphi 0, %s33
      %p30 = scmp.ge.s32.totalorder %s29, 4
      %s39 = sphi 0, %s41
      %s42 = sphi 0, %s39
      %s43 = sphi 0, %s42
      %s59 = sphi 0, %s43
      %s63 = sphi 0, %s63
      %s65 = sphi 0, %s63
      %s66 = sphi 0, %s65
      %s80 = sphi 0, %s66
      %s84 = sphi 0, %s84
      %s86 = sphi 0, %s84
      %s87 = sphi 0, %s86
      %s101 = sphi 0, %s87
      %s105 = sphi 0, %s105
      %s107 = sphi 0, %s105
      %s108 = sphi 0, %s107
      %s122 = sphi 0, %s108
      %s126 = sphi 0, %s126
      %s128 = sphi 0, %s126
      %s129 = sphi 0, %s128
      %s143 = sphi 0, %s129
      %s147 = sphi 0, %s147
      %s149 = sphi 0, %s147
      %s150 = sphi 0, %s149
      %s164 = sphi 0, %s150
      %s168 = sphi 0, %s168
      %s170 = sphi 0, %s168
      %s171 = sphi 0, %s170
      %s185 = sphi 0, %s171
      %s189 = sphi 0, %s189
      %s191 = sphi 0, %s189
      %s192 = sphi 0, %s191
      %s206 = sphi 0, %s192
      %s210 = sphi 0, %s210
      %s212 = sphi 0, %s210
      %s213 = sphi 0, %s212
      %s227 = sphi 0, %s213
      %s231 = sphi 0, %s231
      %s233 = sphi 0, %s231
      %s234 = sphi 0, %s233
      %s248 = sphi 0, %s234
      %s252 = sphi 0, %s252
      %s254 = sphi 0, %s252
      %s255 = sphi 0, %s254
      %s269 = sphi 0, %s255
      %s273 = sphi 0, %s273
      %s275 = sphi 0, %s273
      %s276 = sphi 0, %s275
      %s290 = sphi 0, %s276
      %s294 = sphi 0, %s294
      %s296 = sphi 0, %s294
      %s297 = sphi 0, %s296
      %s311 = sphi 0, %s297
      %s317 = sphi 0, %s319
      %s320 = sphi 0, %s317
      %s321 = sphi 0, %s320
      %s337 = sphi 0, %s321
    $region4: #{tpu_custom_call.1} parent=1 // loop_header_branch
      %32 = sbr.rel (%p30) target = $region8
    $region5: #{tpu_custom_call.1} parent=1 // loop_body
      %s34 = ssub.s32 %s29, 1
      %s35 = ssub.s32 %s29, 2
      %s36 = sadd.s32 %s29, 1
      %s37 = ssub.s32 %s29, %s36
      %p38 = scmp.eq.s32.totalorder %s37, 0
      %s40 = sadd.s32 %s39, 1
      %s41 = scalar_select %p38, %s39, %s40
      %p44 = pneg %p38
      %p45 = scmp.eq.s32.totalorder %s29, 1
      %p46 = por %p44, %p45
      %p47 = scmp.ne.s32.totalorder %s39, %s42
      %p48 = scmp.eq.s32.totalorder %s29, 0
      %p49 = por %p47, %p48
      %p50 = scmp.ne.s32.totalorder %s39, %s42
      %p51 = scmp.eq.s32.totalorder %s34, 1
      %p52 = por %p50, %p51
      %p53 = scmp.ne.s32.totalorder %s42, %s43
      %p54 = scmp.eq.s32.totalorder %s34, 0
      %p55 = por %p53, %p54
      %p56 = scmp.ne.s32.totalorder %s42, %s43
      %p57 = scmp.eq.s32.totalorder %s35, 1
      %p58 = por %p56, %p57
      %p60 = scmp.ne.s32.totalorder %s43, %s59
      %p61 = scmp.eq.s32.totalorder %s35, 0
      %p62 = por %p60, %p61
      %s64 = sadd.s32 %s63, 1
      %p67 = scmp.eq.s32.totalorder %s29, 1
      %p68 = scmp.ne.s32.totalorder %s63, %s65
      %p69 = scmp.eq.s32.totalorder %s29, 0
      %p70 = por %p68, %p69
      %p71 = scmp.ne.s32.totalorder %s63, %s65
      %p72 = scmp.eq.s32.totalorder %s34, 1
      %p73 = por %p71, %p72
      %p74 = scmp.ne.s32.totalorder %s65, %s66
      %p75 = scmp.eq.s32.totalorder %s34, 0
      %p76 = por %p74, %p75
      %p77 = scmp.ne.s32.totalorder %s65, %s66
      %p78 = scmp.eq.s32.totalorder %s35, 1
      %p79 = por %p77, %p78
      %p81 = scmp.ne.s32.totalorder %s66, %s80
      %p82 = scmp.eq.s32.totalorder %s35, 0
      %p83 = por %p81, %p82
      %s85 = sadd.s32 %s84, 1
      %p88 = scmp.eq.s32.totalorder %s29, 1
      %p89 = scmp.ne.s32.totalorder %s84, %s86
      %p90 = scmp.eq.s32.totalorder %s29, 0
      %p91 = por %p89, %p90
      %p92 = scmp.ne.s32.totalorder %s84, %s86
      %p93 = scmp.eq.s32.totalorder %s34, 1
      %p94 = por %p92, %p93
      %p95 = scmp.ne.s32.totalorder %s86, %s87
      %p96 = scmp.eq.s32.totalorder %s34, 0
      %p97 = por %p95, %p96
      %p98 = scmp.ne.s32.totalorder %s86, %s87
      %p99 = scmp.eq.s32.totalorder %s35, 1
      %p100 = por %p98, %p99
      %p102 = scmp.ne.s32.totalorder %s87, %s101
      %p103 = scmp.eq.s32.totalorder %s35, 0
      %p104 = por %p102, %p103
      %s106 = sadd.s32 %s105, 1
      %p109 = scmp.eq.s32.totalorder %s29, 1
      %p110 = scmp.ne.s32.totalorder %s105, %s107
      %p111 = scmp.eq.s32.totalorder %s29, 0
      %p112 = por %p110, %p111
      %p113 = scmp.ne.s32.totalorder %s105, %s107
      %p114 = scmp.eq.s32.totalorder %s34, 1
      %p115 = por %p113, %p114
      %p116 = scmp.ne.s32.totalorder %s107, %s108
      %p117 = scmp.eq.s32.totalorder %s34, 0
      %p118 = por %p116, %p117
      %p119 = scmp.ne.s32.totalorder %s107, %s108
      %p120 = scmp.eq.s32.totalorder %s35, 1
      %p121 = por %p119, %p120
      %p123 = scmp.ne.s32.totalorder %s108, %s122
      %p124 = scmp.eq.s32.totalorder %s35, 0
      %p125 = por %p123, %p124
      %s127 = sadd.s32 %s126, 1
      %p130 = scmp.eq.s32.totalorder %s29, 1
      %p131 = scmp.ne.s32.totalorder %s126, %s128
      %p132 = scmp.eq.s32.totalorder %s29, 0
      %p133 = por %p131, %p132
      %p134 = scmp.ne.s32.totalorder %s126, %s128
      %p135 = scmp.eq.s32.totalorder %s34, 1
      %p136 = por %p134, %p135
      %p137 = scmp.ne.s32.totalorder %s128, %s129
      %p138 = scmp.eq.s32.totalorder %s34, 0
      %p139 = por %p137, %p138
      %p140 = scmp.ne.s32.totalorder %s128, %s129
      %p141 = scmp.eq.s32.totalorder %s35, 1
      %p142 = por %p140, %p141
      %p144 = scmp.ne.s32.totalorder %s129, %s143
      %p145 = scmp.eq.s32.totalorder %s35, 0
      %p146 = por %p144, %p145
      %s148 = sadd.s32 %s147, 1
      %p151 = scmp.eq.s32.totalorder %s29, 1
      %p152 = scmp.ne.s32.totalorder %s147, %s149
      %p153 = scmp.eq.s32.totalorder %s29, 0
      %p154 = por %p152, %p153
      %p155 = scmp.ne.s32.totalorder %s147, %s149
      %p156 = scmp.eq.s32.totalorder %s34, 1
      %p157 = por %p155, %p156
      %p158 = scmp.ne.s32.totalorder %s149, %s150
      %p159 = scmp.eq.s32.totalorder %s34, 0
      %p160 = por %p158, %p159
      %p161 = scmp.ne.s32.totalorder %s149, %s150
      %p162 = scmp.eq.s32.totalorder %s35, 1
      %p163 = por %p161, %p162
      %p165 = scmp.ne.s32.totalorder %s150, %s164
      %p166 = scmp.eq.s32.totalorder %s35, 0
      %p167 = por %p165, %p166
      %s169 = sadd.s32 %s168, 1
      %p172 = scmp.eq.s32.totalorder %s29, 1
      %p173 = scmp.ne.s32.totalorder %s168, %s170
      %p174 = scmp.eq.s32.totalorder %s29, 0
      %p175 = por %p173, %p174
      %p176 = scmp.ne.s32.totalorder %s168, %s170
      %p177 = scmp.eq.s32.totalorder %s34, 1
      %p178 = por %p176, %p177
      %p179 = scmp.ne.s32.totalorder %s170, %s171
      %p180 = scmp.eq.s32.totalorder %s34, 0
      %p181 = por %p179, %p180
      %p182 = scmp.ne.s32.totalorder %s170, %s171
      %p183 = scmp.eq.s32.totalorder %s35, 1
      %p184 = por %p182, %p183
      %p186 = scmp.ne.s32.totalorder %s171, %s185
      %p187 = scmp.eq.s32.totalorder %s35, 0
      %p188 = por %p186, %p187
      %s190 = sadd.s32 %s189, 1
      %p193 = scmp.eq.s32.totalorder %s29, 1
      %p194 = scmp.ne.s32.totalorder %s189, %s191
      %p195 = scmp.eq.s32.totalorder %s29, 0
      %p196 = por %p194, %p195
      %p197 = scmp.ne.s32.totalorder %s189, %s191
      %p198 = scmp.eq.s32.totalorder %s34, 1
      %p199 = por %p197, %p198
      %p200 = scmp.ne.s32.totalorder %s191, %s192
      %p201 = scmp.eq.s32.totalorder %s34, 0
      %p202 = por %p200, %p201
      %p203 = scmp.ne.s32.totalorder %s191, %s192
      %p204 = scmp.eq.s32.totalorder %s35, 1
      %p205 = por %p203, %p204
      %p207 = scmp.ne.s32.totalorder %s192, %s206
      %p208 = scmp.eq.s32.totalorder %s35, 0
      %p209 = por %p207, %p208
      %s211 = sadd.s32 %s210, 1
      %p214 = scmp.eq.s32.totalorder %s29, 1
      %p215 = scmp.ne.s32.totalorder %s210, %s212
      %p216 = scmp.eq.s32.totalorder %s29, 0
      %p217 = por %p215, %p216
      %p218 = scmp.ne.s32.totalorder %s210, %s212
      %p219 = scmp.eq.s32.totalorder %s34, 1
      %p220 = por %p218, %p219
      %p221 = scmp.ne.s32.totalorder %s212, %s213
      %p222 = scmp.eq.s32.totalorder %s34, 0
      %p223 = por %p221, %p222
      %p224 = scmp.ne.s32.totalorder %s212, %s213
      %p225 = scmp.eq.s32.totalorder %s35, 1
      %p226 = por %p224, %p225
      %p228 = scmp.ne.s32.totalorder %s213, %s227
      %p229 = scmp.eq.s32.totalorder %s35, 0
      %p230 = por %p228, %p229
      %s232 = sadd.s32 %s231, 1
      %p235 = scmp.eq.s32.totalorder %s29, 1
      %p236 = scmp.ne.s32.totalorder %s231, %s233
      %p237 = scmp.eq.s32.totalorder %s29, 0
      %p238 = por %p236, %p237
      %p239 = scmp.ne.s32.totalorder %s231, %s233
      %p240 = scmp.eq.s32.totalorder %s34, 1
      %p241 = por %p239, %p240
      %p242 = scmp.ne.s32.totalorder %s233, %s234
      %p243 = scmp.eq.s32.totalorder %s34, 0
      %p244 = por %p242, %p243
      %p245 = scmp.ne.s32.totalorder %s233, %s234
      %p246 = scmp.eq.s32.totalorder %s35, 1
      %p247 = por %p245, %p246
      %p249 = scmp.ne.s32.totalorder %s234, %s248
      %p250 = scmp.eq.s32.totalorder %s35, 0
      %p251 = por %p249, %p250
      %s253 = sadd.s32 %s252, 1
      %p256 = scmp.eq.s32.totalorder %s29, 1
      %p257 = scmp.ne.s32.totalorder %s252, %s254
      %p258 = scmp.eq.s32.totalorder %s29, 0
      %p259 = por %p257, %p258
      %p260 = scmp.ne.s32.totalorder %s252, %s254
      %p261 = scmp.eq.s32.totalorder %s34, 1
      %p262 = por %p260, %p261
      %p263 = scmp.ne.s32.totalorder %s254, %s255
      %p264 = scmp.eq.s32.totalorder %s34, 0
      %p265 = por %p263, %p264
      %p266 = scmp.ne.s32.totalorder %s254, %s255
      %p267 = scmp.eq.s32.totalorder %s35, 1
      %p268 = por %p266, %p267
      %p270 = scmp.ne.s32.totalorder %s255, %s269
      %p271 = scmp.eq.s32.totalorder %s35, 0
      %p272 = por %p270, %p271
      %s274 = sadd.s32 %s273, 1
      %p277 = scmp.eq.s32.totalorder %s29, 1
      %p278 = scmp.ne.s32.totalorder %s273, %s275
      %p279 = scmp.eq.s32.totalorder %s29, 0
      %p280 = por %p278, %p279
      %p281 = scmp.ne.s32.totalorder %s273, %s275
      %p282 = scmp.eq.s32.totalorder %s34, 1
      %p283 = por %p281, %p282
      %p284 = scmp.ne.s32.totalorder %s275, %s276
      %p285 = scmp.eq.s32.totalorder %s34, 0
      %p286 = por %p284, %p285
      %p287 = scmp.ne.s32.totalorder %s275, %s276
      %p288 = scmp.eq.s32.totalorder %s35, 1
      %p289 = por %p287, %p288
      %p291 = scmp.ne.s32.totalorder %s276, %s290
      %p292 = scmp.eq.s32.totalorder %s35, 0
      %p293 = por %p291, %p292
      %s295 = sadd.s32 %s294, 1
      %p298 = scmp.eq.s32.totalorder %s29, 1
      %p299 = scmp.ne.s32.totalorder %s294, %s296
      %p300 = scmp.eq.s32.totalorder %s29, 0
      %p301 = por %p299, %p300
      %p302 = scmp.ne.s32.totalorder %s294, %s296
      %p303 = scmp.eq.s32.totalorder %s34, 1
      %p304 = por %p302, %p303
      %p305 = scmp.ne.s32.totalorder %s296, %s297
      %p306 = scmp.eq.s32.totalorder %s34, 0
      %p307 = por %p305, %p306
      %p308 = scmp.ne.s32.totalorder %s296, %s297
      %p309 = scmp.eq.s32.totalorder %s35, 1
      %p310 = por %p308, %p309
      %p312 = scmp.ne.s32.totalorder %s297, %s311
      %p313 = scmp.eq.s32.totalorder %s35, 0
      %p314 = por %p312, %p313
      %s315 = ssub.s32 %s29, %s36
      %p316 = scmp.eq.s32.totalorder %s315, 0
      %s318 = sadd.s32 %s317, 1
      %s319 = scalar_select %p316, %s317, %s318
      %p322 = pneg %p316
      %p323 = scmp.eq.s32.totalorder %s29, 1
      %p324 = por %p322, %p323
      %p325 = scmp.ne.s32.totalorder %s317, %s320
      %p326 = scmp.eq.s32.totalorder %s29, 0
      %p327 = por %p325, %p326
      %p328 = scmp.ne.s32.totalorder %s317, %s320
      %p329 = scmp.eq.s32.totalorder %s34, 1
      %p330 = por %p328, %p329
      %p331 = scmp.ne.s32.totalorder %s320, %s321
      %p332 = scmp.eq.s32.totalorder %s34, 0
      %p333 = por %p331, %p332
      %p334 = scmp.ne.s32.totalorder %s320, %s321
      %p335 = scmp.eq.s32.totalorder %s35, 1
      %p336 = por %p334, %p335
      %p338 = scmp.ne.s32.totalorder %s321, %s337
      %p339 = scmp.eq.s32.totalorder %s35, 0
      %p340 = por %p338, %p339
      %p341 = scmp.le.s32.totalorder 1, %s29
      %p342 = scmp.lt.s32.totalorder %s29, 3
      %p343 = pnand %p341, %p342
      %p344 = pneg %p343
      // Predicated region
      $region9: #{tpu_custom_call.1} parent=5 // pred_check
        _
      $region10: #{tpu_custom_call.1} parent=5 // pred_check_branch
        %346 = sbr.rel (%p343) target = $region12
      $region11: #{tpu_custom_call.1} parent=5 // pred_region
        %s347 = ssub.s32 %s29, 1
        // Predicated region
        $region13: #{tpu_custom_call.1} parent=11 // pred_check
          %p348 = pneg %p76
        $region14: #{tpu_custom_call.1} parent=11 // pred_check_branch
          %350 = sbr.rel (%p348) target = $region16
        $region15: #{tpu_custom_call.1} parent=11 // pred_region
          %352 = vsyncadd [#allocation6], 0
          %s353 = sshll.u32 %s1, 4
          %s354 = int_to_ptr.hbm [resolvable:$true] %s353
          %s355 = sshll.u32 [#allocation5], 4
          %s356 = int_to_ptr.vmem [resolvable:$true] %s355
          %361 = dma.hbm_to_vmem [thread:$0]  %s354, 256, %s356, [#allocation6], 128, 128, 8
        $region16: #{tpu_custom_call.1} parent=11 // pred_fallthru
          _
        // Predicated region
        $region17: #{tpu_custom_call.1} parent=11 // pred_check
          %p362 = pneg %p97
        $region18: #{tpu_custom_call.1} parent=11 // pred_check_branch
          %364 = sbr.rel (%p362) target = $region20
        $region19: #{tpu_custom_call.1} parent=11 // pred_region
          %366 = vsyncadd [#allocation6], 0
          %s367 = sshll.u32 %s2, 4
          %s368 = int_to_ptr.hbm [resolvable:$true] %s367
          %s369 = sshll.u32 [#allocation7], 4
          %s370 = int_to_ptr.vmem [resolvable:$true] %s369
          %375 = dma.hbm_to_vmem [thread:$0]  %s368, 256, %s370, [#allocation6], 128, 128, 8
        $region20: #{tpu_custom_call.1} parent=11 // pred_fallthru
          _
        // Predicated region
        $region21: #{tpu_custom_call.1} parent=11 // pred_check
          %p376 = pneg %p118
        $region22: #{tpu_custom_call.1} parent=11 // pred_check_branch
          %378 = sbr.rel (%p376) target = $region24
        $region23: #{tpu_custom_call.1} parent=11 // pred_region
          _
        $region24: #{tpu_custom_call.1} parent=11 // pred_fallthru
          _
        // Predicated region
        $region25: #{tpu_custom_call.1} parent=11 // pred_check
          %p379 = pneg %p139
        $region26: #{tpu_custom_call.1} parent=11 // pred_check_branch
          %381 = sbr.rel (%p379) target = $region28
        $region27: #{tpu_custom_call.1} parent=11 // pred_region
          %383 = vsyncadd [#allocation9], 0
          %s385 = sshll.u32 %s4, 4
          %s386 = int_to_ptr.hbm [resolvable:$true] %s385
          %s387 = sshll.u32 [#allocation8], 4
          %s388 = int_to_ptr.vmem [resolvable:$true] %s387
          %390 = dma.hbm_to_vmem [thread:$0]  %s386, 16, %s388, [#allocation9]
        $region28: #{tpu_custom_call.1} parent=11 // pred_fallthru
          _
        // Predicated region
        $region29: #{tpu_custom_call.1} parent=11 // pred_check
          %p391 = pneg %p160
        $region30: #{tpu_custom_call.1} parent=11 // pred_check_branch
          %393 = sbr.rel (%p391) target = $region32
        $region31: #{tpu_custom_call.1} parent=11 // pred_region
          %395 = vsyncadd [#allocation9], 0
          %s397 = sshll.u32 %s5, 4
          %s398 = int_to_ptr.hbm [resolvable:$true] %s397
          %s399 = sshll.u32 [#allocation10], 4
          %s400 = int_to_ptr.vmem [resolvable:$true] %s399
          %402 = dma.hbm_to_vmem [thread:$0]  %s398, 16, %s400, [#allocation9]
        $region32: #{tpu_custom_call.1} parent=11 // pred_fallthru
          _
        // Predicated region
        $region33: #{tpu_custom_call.1} parent=11 // pred_check
          %p403 = pneg %p181
        $region34: #{tpu_custom_call.1} parent=11 // pred_check_branch
          %405 = sbr.rel (%p403) target = $region36
        $region35: #{tpu_custom_call.1} parent=11 // pred_region
          _
        $region36: #{tpu_custom_call.1} parent=11 // pred_fallthru
          _
        // Predicated region
        $region37: #{tpu_custom_call.1} parent=11 // pred_check
          %p406 = pneg %p202
        $region38: #{tpu_custom_call.1} parent=11 // pred_check_branch
          %408 = sbr.rel (%p406) target = $region40
        $region39: #{tpu_custom_call.1} parent=11 // pred_region
          _
        $region40: #{tpu_custom_call.1} parent=11 // pred_fallthru
          _
        // Predicated region
        $region41: #{tpu_custom_call.1} parent=11 // pred_check
          %p409 = pneg %p223
        $region42: #{tpu_custom_call.1} parent=11 // pred_check_branch
          %411 = sbr.rel (%p409) target = $region44
        $region43: #{tpu_custom_call.1} parent=11 // pred_region
          _
        $region44: #{tpu_custom_call.1} parent=11 // pred_fallthru
          _
        // Predicated region
        $region45: #{tpu_custom_call.1} parent=11 // pred_check
          %p412 = pneg %p244
        $region46: #{tpu_custom_call.1} parent=11 // pred_check_branch
          %414 = sbr.rel (%p412) target = $region48
        $region47: #{tpu_custom_call.1} parent=11 // pred_region
          %416 = vsyncadd [#allocation12], 0
          %s417 = sshll.u32 %s9, 4
          %s418 = int_to_ptr.hbm [resolvable:$true] %s417
          %s419 = sshll.u32 [#allocation11], 4
          %s420 = int_to_ptr.vmem [resolvable:$true] %s419
          %425 = dma.hbm_to_vmem [thread:$0]  %s418, 1024, %s420, [#allocation12], 128, 128, 8
        $region48: #{tpu_custom_call.1} parent=11 // pred_fallthru
          _
        // Predicated region
        $region49: #{tpu_custom_call.1} parent=11 // pred_check
          %p426 = pneg %p265
        $region50: #{tpu_custom_call.1} parent=11 // pred_check_branch
          %428 = sbr.rel (%p426) target = $region52
        $region51: #{tpu_custom_call.1} parent=11 // pred_region
          %430 = vsyncadd [#allocation12], 0
          %s431 = sshll.u32 %s10, 4
          %s432 = int_to_ptr.hbm [resolvable:$true] %s431
          %s433 = sshll.u32 [#allocation13], 4
          %s434 = int_to_ptr.vmem [resolvable:$true] %s433
          %439 = dma.hbm_to_vmem [thread:$0]  %s432, 1024, %s434, [#allocation12], 128, 128, 8
        $region52: #{tpu_custom_call.1} parent=11 // pred_fallthru
          _
        // Predicated region
        $region53: #{tpu_custom_call.1} parent=11 // pred_check
          %p440 = pneg %p286
        $region54: #{tpu_custom_call.1} parent=11 // pred_check_branch
          %442 = sbr.rel (%p440) target = $region56
        $region55: #{tpu_custom_call.1} parent=11 // pred_region
          %444 = vsyncadd [#allocation15], 0
          %s445 = sshll.u32 %s11, 4
          %s446 = int_to_ptr.hbm [resolvable:$true] %s445
          %s447 = sshll.u32 [#allocation14], 4
          %s448 = int_to_ptr.vmem [resolvable:$true] %s447
          %453 = dma.hbm_to_vmem [thread:$0]  %s446, 1024, %s448, [#allocation15], 128, 128, 8
        $region56: #{tpu_custom_call.1} parent=11 // pred_fallthru
          _
        // Predicated region
        $region57: #{tpu_custom_call.1} parent=11 // pred_check
          %p454 = pneg %p307
        $region58: #{tpu_custom_call.1} parent=11 // pred_check_branch
          %456 = sbr.rel (%p454) target = $region60
        $region59: #{tpu_custom_call.1} parent=11 // pred_region
          _
        $region60: #{tpu_custom_call.1} parent=11 // pred_fallthru
          _
      $region12: #{tpu_custom_call.1} parent=5 // pred_fallthru
        _
      %p457 = scmp.lt.s32.totalorder %s29, 2
      // Predicated region
      $region61: #{tpu_custom_call.1} parent=5 // pred_check
        %p458 = pneg %p457
      $region62: #{tpu_custom_call.1} parent=5 // pred_check_branch
        %460 = sbr.rel (%p458) target = $region64
      $region63: #{tpu_custom_call.1} parent=5 // pred_region
        // Predicated region
        $region65: #{tpu_custom_call.1} parent=63 // pred_check
          %p461 = pneg %p49
        $region66: #{tpu_custom_call.1} parent=63 // pred_check_branch
          %463 = sbr.rel (%p461) target = $region68
        $region67: #{tpu_custom_call.1} parent=63 // pred_region
          %s464 = sand.u32 %s39, 1
          %s465 = scalar_lea.sflag [#allocation3], %s464
          %s466 = sand.u32 %s39, 1
          %s467 = smul.addr %s466, 128
          %s468 = scalar_lea.vmem [#allocation2], %s467
          %s469 = smul.u32 8, %s29
          %471 = vsyncadd %s465, 0
          %s472 = smul.addr %s469, 2
          %s473 = smul.addr %s472, 8
          %s474 = scalar_lea.hbm %s0, %s473
          %s475 = sshll.u32 %s474, 4
          %s476 = int_to_ptr.hbm [resolvable:$true] %s475
          %s477 = sshll.u32 %s468, 4
          %s478 = int_to_ptr.vmem [resolvable:$true] %s477
          %483 = dma.hbm_to_vmem [thread:$0]  %s476, 2048, %s478, %s465, 128, 128, 8
        $region68: #{tpu_custom_call.1} parent=63 // pred_fallthru
          _
      $region64: #{tpu_custom_call.1} parent=5 // pred_fallthru
        _
      %p484 = scmp.le.s32.totalorder 1, %s29
      %p485 = scmp.lt.s32.totalorder %s29, 3
      %p486 = pnand %p484, %p485
      %p487 = pneg %p486
      // Predicated region
      $region69: #{tpu_custom_call.1} parent=5 // pred_check
        _
      $region70: #{tpu_custom_call.1} parent=5 // pred_check_branch
        %489 = sbr.rel (%p486) target = $region72
      $region71: #{tpu_custom_call.1} parent=5 // pred_region
        %s490 = ssub.s32 %s29, 1
        %s491 = sand.u32 %s42, 1
        %s492 = scalar_lea.sflag [#allocation3], %s491
        %s493 = sand.u32 %s42, 1
        %s494 = smul.addr %s493, 128
        %s495 = scalar_lea.vmem [#allocation2], %s494
        // Predicated region
        $region73: #{tpu_custom_call.1} parent=71 // pred_check
          %p496 = pneg %p55
        $region74: #{tpu_custom_call.1} parent=71 // pred_check_branch
          %498 = sbr.rel (%p496) target = $region76
        $region75: #{tpu_custom_call.1} parent=71 // pred_region
          %500 = dma.done %s492, 2048
        $region76: #{tpu_custom_call.1} parent=71 // pred_fallthru
          _
        // Predicated region
        $region77: #{tpu_custom_call.1} parent=71 // pred_check
          %p501 = pneg %p76
        $region78: #{tpu_custom_call.1} parent=71 // pred_check_branch
          %503 = sbr.rel (%p501) target = $region80
        $region79: #{tpu_custom_call.1} parent=71 // pred_region
          %505 = dma.done [#allocation6], 256
        $region80: #{tpu_custom_call.1} parent=71 // pred_fallthru
          _
        // Predicated region
        $region81: #{tpu_custom_call.1} parent=71 // pred_check
          %p506 = pneg %p97
        $region82: #{tpu_custom_call.1} parent=71 // pred_check_branch
          %508 = sbr.rel (%p506) target = $region84
        $region83: #{tpu_custom_call.1} parent=71 // pred_region
          %510 = dma.done [#allocation6], 256
        $region84: #{tpu_custom_call.1} parent=71 // pred_fallthru
          _
        // Predicated region
        $region85: #{tpu_custom_call.1} parent=71 // pred_check
          %p511 = pneg %p139
        $region86: #{tpu_custom_call.1} parent=71 // pred_check_branch
          %513 = sbr.rel (%p511) target = $region88
        $region87: #{tpu_custom_call.1} parent=71 // pred_region
          %515 = dma.done [#allocation9], 16
        $region88: #{tpu_custom_call.1} parent=71 // pred_fallthru
          _
        // Predicated region
        $region89: #{tpu_custom_call.1} parent=71 // pred_check
          %p516 = pneg %p160
        $region90: #{tpu_custom_call.1} parent=71 // pred_check_branch
          %518 = sbr.rel (%p516) target = $region92
        $region91: #{tpu_custom_call.1} parent=71 // pred_region
          %520 = dma.done [#allocation9], 16
        $region92: #{tpu_custom_call.1} parent=71 // pred_fallthru
          _
        // Predicated region
        $region93: #{tpu_custom_call.1} parent=71 // pred_check
          %p521 = pneg %p244
        $region94: #{tpu_custom_call.1} parent=71 // pred_check_branch
          %523 = sbr.rel (%p521) target = $region96
        $region95: #{tpu_custom_call.1} parent=71 // pred_region
          %525 = dma.done [#allocation12], 1024
        $region96: #{tpu_custom_call.1} parent=71 // pred_fallthru
          _
        // Predicated region
        $region97: #{tpu_custom_call.1} parent=71 // pred_check
          %p526 = pneg %p265
        $region98: #{tpu_custom_call.1} parent=71 // pred_check_branch
          %528 = sbr.rel (%p526) target = $region100
        $region99: #{tpu_custom_call.1} parent=71 // pred_region
          %530 = dma.done [#allocation12], 1024
        $region100: #{tpu_custom_call.1} parent=71 // pred_fallthru
          _
        // Predicated region
        $region101: #{tpu_custom_call.1} parent=71 // pred_check
          %p531 = pneg %p286
        $region102: #{tpu_custom_call.1} parent=71 // pred_check_branch
          %533 = sbr.rel (%p531) target = $region104
        $region103: #{tpu_custom_call.1} parent=71 // pred_region
          %535 = dma.done [#allocation15], 1024
        $region104: #{tpu_custom_call.1} parent=71 // pred_fallthru
          _
        %s536 = sand.u32 %s42, 1
        %s537 = scalar_lea.sflag [#allocation3], %s536
        %s538 = sand.u32 %s42, 1
        %s539 = smul.addr %s538, 128
        %s540 = scalar_lea.vmem [#allocation2], %s539
        %p541 = pneg %p55
        %p542 = pneg %p52
        %p543 = pneg %p76
        %p544 = pneg %p73
        %p545 = pneg %p97
        %p546 = pneg %p94
        %p547 = pneg %p118
        %p548 = pneg %p115
        %p549 = pneg %p139
        %p550 = pneg %p136
        %p551 = pneg %p160
        %p552 = pneg %p157
        %p553 = pneg %p181
        %p554 = pneg %p178
        %p555 = pneg %p202
        %p556 = pneg %p199
        %p557 = pneg %p223
        %p558 = pneg %p220
        %p559 = pneg %p244
        %p560 = pneg %p241
        %p561 = pneg %p265
        %p562 = pneg %p262
        %p563 = pneg %p286
        %p564 = pneg %p283
        %p565 = pneg %p307
        %p566 = pneg %p304
        %p567 = pneg %p333
        %p568 = pneg %p330
        %s569 = sand.u32 %s320, 1
        %s570 = scalar_lea.sflag [#allocation4], %s569
        %s571 = sand.u32 %s320, 1
        %s572 = smul.addr %s571, 8
        %s573 = scalar_lea.vmem [#allocation16], %s572
        %s574 = smul.u32 8, %s34
        %v575 = vld [vmem:[%s495] sm:$0xff]
        %v576 = vld [vmem:[%s495 + $0x8] sm:$0xff]
        %v577 = vld [vmem:[%s495 + $0x10] sm:$0xff]
        %v578 = vld [vmem:[%s495 + $0x18] sm:$0xff]
        %v579 = vld [vmem:[%s495 + $0x20] sm:$0xff]
        %v580 = vld [vmem:[%s495 + $0x28] sm:$0xff]
        %v581 = vld [vmem:[%s495 + $0x30] sm:$0xff]
        %v582 = vld [vmem:[%s495 + $0x38] sm:$0xff]
        %v583 = vld [vmem:[%s495 + $0x40] sm:$0xff]
        %v584 = vld [vmem:[%s495 + $0x48] sm:$0xff]
        %v585 = vld [vmem:[%s495 + $0x50] sm:$0xff]
        %v586 = vld [vmem:[%s495 + $0x58] sm:$0xff]
        %v587 = vld [vmem:[%s495 + $0x60] sm:$0xff]
        %v588 = vld [vmem:[%s495 + $0x68] sm:$0xff]
        %v589 = vld [vmem:[%s495 + $0x70] sm:$0xff]
        %v590 = vld [vmem:[%s495 + $0x78] sm:$0xff]
        %v591 = vld [vmem:[#allocation11] sm:$0xff]
        %v592 = vld [vmem:[#allocation11 + $0x8] sm:$0xff]
        %v593 = vld [vmem:[#allocation11 + $0x10] sm:$0xff]
        %v594 = vld [vmem:[#allocation11 + $0x18] sm:$0xff]
        %v595 = vld [vmem:[#allocation11 + $0x20] sm:$0xff]
        %v596 = vld [vmem:[#allocation11 + $0x28] sm:$0xff]
        %v597 = vld [vmem:[#allocation11 + $0x30] sm:$0xff]
        %v598 = vld [vmem:[#allocation11 + $0x38] sm:$0xff]
        %vm599 = vcmask 523264
        %v601 = vsel %vm599, %v575, 0
        %v604 = vsel %vm599, %v576, 0
        %v607 = vsel %vm599, %v577, 0
        %v610 = vsel %vm599, %v578, 0
        %v613 = vsel %vm599, %v579, 0
        %v616 = vsel %vm599, %v580, 0
        %v619 = vsel %vm599, %v581, 0
        %v622 = vsel %vm599, %v582, 0
        %v625 = vsel %vm599, %v583, 0
        %v628 = vsel %vm599, %v584, 0
        %v631 = vsel %vm599, %v585, 0
        %v634 = vsel %vm599, %v586, 0
        %v637 = vsel %vm599, %v587, 0
        %v640 = vsel %vm599, %v588, 0
        %v643 = vsel %vm599, %v589, 0
        %v646 = vsel %vm599, %v590, 0
        %648 = vmatpush.msra.mxu0 0.0
        %649 = vmatpush.msra.mxu0 0.0
        %650 = vmatpush.msra.mxu0 0.0
        %651 = vmatpush.msra.mxu0 0.0
        %652 = vmatpush.msra.mxu0 0.0
        %653 = vmatpush.msra.mxu0 0.0
        %654 = vmatpush.msra.mxu0 0.0
        %655 = vmatpush.msra.mxu0 0.0
        %656 = vmatpush.msra.mxu0 %v598
        %657 = vmatpush.msra.mxu0 %v597
        %658 = vmatpush.msra.mxu0 %v596
        %659 = vmatpush.msra.mxu0 %v595
        %660 = vmatpush.msra.mxu0 %v594
        %661 = vmatpush.msra.mxu0 %v593
        %662 = vmatpush.msra.mxu0 %v592
        %663 = vmatpush.msra.mxu0 %v591
        %664 = vmatmul.f32.gmra.mxu0 %v601
        %v665 = vpop.f32.mrf.mxu0
        %v666 = vadd.f32 0.0, %v665
        %667 = vmatmul.f32.gmra.mxu0 %v604
        %v668 = vpop.f32.mrf.mxu0
        %v669 = vadd.f32 0.0, %v668
        %670 = vmatmul.f32.gmra.mxu0 %v607
        %v671 = vpop.f32.mrf.mxu0
        %v672 = vadd.f32 0.0, %v671
        %673 = vmatmul.f32.gmra.mxu0 %v610
        %v674 = vpop.f32.mrf.mxu0
        %v675 = vadd.f32 0.0, %v674
        %676 = vmatmul.f32.gmra.mxu0 %v613
        %v677 = vpop.f32.mrf.mxu0
        %v678 = vadd.f32 0.0, %v677
        %679 = vmatmul.f32.gmra.mxu0 %v616
        %v680 = vpop.f32.mrf.mxu0
        %v681 = vadd.f32 0.0, %v680
        %682 = vmatmul.f32.gmra.mxu0 %v619
        %v683 = vpop.f32.mrf.mxu0
        %v684 = vadd.f32 0.0, %v683
        %685 = vmatmul.f32.gmra.mxu0 %v622
        %v686 = vpop.f32.mrf.mxu0
        %v687 = vadd.f32 0.0, %v686
        %688 = vmatmul.f32.gmra.mxu0 %v625
        %v689 = vpop.f32.mrf.mxu0
        %v690 = vadd.f32 0.0, %v689
        %691 = vmatmul.f32.gmra.mxu0 %v628
        %v692 = vpop.f32.mrf.mxu0
        %v693 = vadd.f32 0.0, %v692
        %694 = vmatmul.f32.gmra.mxu0 %v631
        %v695 = vpop.f32.mrf.mxu0
        %v696 = vadd.f32 0.0, %v695
        %697 = vmatmul.f32.gmra.mxu0 %v634
        %v698 = vpop.f32.mrf.mxu0
        %v699 = vadd.f32 0.0, %v698
        %700 = vmatmul.f32.gmra.mxu0 %v637
        %v701 = vpop.f32.mrf.mxu0
        %v702 = vadd.f32 0.0, %v701
        %703 = vmatmul.f32.gmra.mxu0 %v640
        %v704 = vpop.f32.mrf.mxu0
        %v705 = vadd.f32 0.0, %v704
        %706 = vmatmul.f32.gmra.mxu0 %v643
        %v707 = vpop.f32.mrf.mxu0
        %v708 = vadd.f32 0.0, %v707
        %709 = vmatmul.f32.gmra.mxu0 %v646
        %v710 = vpop.f32.mrf.mxu0
        %v711 = vadd.f32 0.0, %v710
        %712 = vdwg.mxu0
        %v713 = vld [vmem:[#allocation13] sm:$0xff]
        %v714 = vld [vmem:[#allocation13 + $0x8] sm:$0xff]
        %v715 = vld [vmem:[#allocation13 + $0x10] sm:$0xff]
        %v716 = vld [vmem:[#allocation13 + $0x18] sm:$0xff]
        %v717 = vld [vmem:[#allocation13 + $0x20] sm:$0xff]
        %v718 = vld [vmem:[#allocation13 + $0x28] sm:$0xff]
        %v719 = vld [vmem:[#allocation13 + $0x30] sm:$0xff]
        %v720 = vld [vmem:[#allocation13 + $0x38] sm:$0xff]
        %721 = vmatpush.msra.mxu0 0.0
        %722 = vmatpush.msra.mxu0 0.0
        %723 = vmatpush.msra.mxu0 0.0
        %724 = vmatpush.msra.mxu0 0.0
        %725 = vmatpush.msra.mxu0 0.0
        %726 = vmatpush.msra.mxu0 0.0
        %727 = vmatpush.msra.mxu0 0.0
        %728 = vmatpush.msra.mxu0 0.0
        %729 = vmatpush.msra.mxu0 %v720
        %730 = vmatpush.msra.mxu0 %v719
        %731 = vmatpush.msra.mxu0 %v718
        %732 = vmatpush.msra.mxu0 %v717
        %733 = vmatpush.msra.mxu0 %v716
        %734 = vmatpush.msra.mxu0 %v715
        %735 = vmatpush.msra.mxu0 %v714
        %736 = vmatpush.msra.mxu0 %v713
        %737 = vmatmul.f32.gmra.mxu0 %v601
        %v738 = vpop.f32.mrf.mxu0
        %v739 = vadd.f32 0.0, %v738
        %740 = vmatmul.f32.gmra.mxu0 %v604
        %v741 = vpop.f32.mrf.mxu0
        %v742 = vadd.f32 0.0, %v741
        %743 = vmatmul.f32.gmra.mxu0 %v607
        %v744 = vpop.f32.mrf.mxu0
        %v745 = vadd.f32 0.0, %v744
        %746 = vmatmul.f32.gmra.mxu0 %v610
        %v747 = vpop.f32.mrf.mxu0
        %v748 = vadd.f32 0.0, %v747
        %749 = vmatmul.f32.gmra.mxu0 %v613
        %v750 = vpop.f32.mrf.mxu0
        %v751 = vadd.f32 0.0, %v750
        %752 = vmatmul.f32.gmra.mxu0 %v616
        %v753 = vpop.f32.mrf.mxu0
        %v754 = vadd.f32 0.0, %v753
        %755 = vmatmul.f32.gmra.mxu0 %v619
        %v756 = vpop.f32.mrf.mxu0
        %v757 = vadd.f32 0.0, %v756
        %758 = vmatmul.f32.gmra.mxu0 %v622
        %v759 = vpop.f32.mrf.mxu0
        %v760 = vadd.f32 0.0, %v759
        %761 = vmatmul.f32.gmra.mxu0 %v625
        %v762 = vpop.f32.mrf.mxu0
        %v763 = vadd.f32 0.0, %v762
        %764 = vmatmul.f32.gmra.mxu0 %v628
        %v765 = vpop.f32.mrf.mxu0
        %v766 = vadd.f32 0.0, %v765
        %767 = vmatmul.f32.gmra.mxu0 %v631
        %v768 = vpop.f32.mrf.mxu0
        %v769 = vadd.f32 0.0, %v768
        %770 = vmatmul.f32.gmra.mxu0 %v634
        %v771 = vpop.f32.mrf.mxu0
        %v772 = vadd.f32 0.0, %v771
        %773 = vmatmul.f32.gmra.mxu0 %v637
        %v774 = vpop.f32.mrf.mxu0
        %v775 = vadd.f32 0.0, %v774
        %776 = vmatmul.f32.gmra.mxu0 %v640
        %v777 = vpop.f32.mrf.mxu0
        %v778 = vadd.f32 0.0, %v777
        %779 = vmatmul.f32.gmra.mxu0 %v643
        %v780 = vpop.f32.mrf.mxu0
        %v781 = vadd.f32 0.0, %v780
        %782 = vmatmul.f32.gmra.mxu0 %v646
        %v783 = vpop.f32.mrf.mxu0
        %v784 = vadd.f32 0.0, %v783
        %785 = vdwg.mxu0
        %v786 = vld [vmem:[#allocation5] sm:$0xff]
        %v787 = vld [vmem:[#allocation5 + $0x8] sm:$0xff]
        %v788 = vadd.f32 %v666, %v786
        %v789 = vadd.f32 %v669, %v787
        %v790 = vadd.f32 %v672, %v786
        %v791 = vadd.f32 %v675, %v787
        %v792 = vadd.f32 %v678, %v786
        %v793 = vadd.f32 %v681, %v787
        %v794 = vadd.f32 %v684, %v786
        %v795 = vadd.f32 %v687, %v787
        %v796 = vadd.f32 %v690, %v786
        %v797 = vadd.f32 %v693, %v787
        %v798 = vadd.f32 %v696, %v786
        %v799 = vadd.f32 %v699, %v787
        %v800 = vadd.f32 %v702, %v786
        %v801 = vadd.f32 %v705, %v787
        %v802 = vadd.f32 %v708, %v786
        %v803 = vadd.f32 %v711, %v787
        %v804 = vld [vmem:[#allocation7] sm:$0xff]
        %v805 = vld [vmem:[#allocation7 + $0x8] sm:$0xff]
        %v806 = vadd.f32 %v739, %v804
        %v807 = vadd.f32 %v742, %v805
        %v808 = vadd.f32 %v745, %v804
        %v809 = vadd.f32 %v748, %v805
        %v810 = vadd.f32 %v751, %v804
        %v811 = vadd.f32 %v754, %v805
        %v812 = vadd.f32 %v757, %v804
        %v813 = vadd.f32 %v760, %v805
        %v814 = vadd.f32 %v763, %v804
        %v815 = vadd.f32 %v766, %v805
        %v816 = vadd.f32 %v769, %v804
        %v817 = vadd.f32 %v772, %v805
        %v818 = vadd.f32 %v775, %v804
        %v819 = vadd.f32 %v778, %v805
        %v820 = vadd.f32 %v781, %v804
        %v821 = vadd.f32 %v784, %v805
        %v822 = vsel %vm599, %v666, 0.0
        %v823 = vsel %vm599, %v669, 0.0
        %v824 = vadd.f32 %v822, %v823
        %v825 = vrot.slane %v824, 4
        %v826 = vadd.f32 %v824, %v825
        %v827 = vrot.slane %v826, 2
        %v828 = vadd.f32 %v826, %v827
        %v829 = vrot.slane %v828, 1
        %v830 = vadd.f32 %v828, %v829
        %v831 = vsel %vm599, %v672, 0.0
        %v832 = vsel %vm599, %v675, 0.0
        %v833 = vadd.f32 %v831, %v832
        %v834 = vrot.slane %v833, 4
        %v835 = vadd.f32 %v833, %v834
        %v836 = vrot.slane %v835, 2
        %v837 = vadd.f32 %v835, %v836
        %v838 = vrot.slane %v837, 1
        %v839 = vadd.f32 %v837, %v838
        %v840 = vsel %vm599, %v678, 0.0
        %v841 = vsel %vm599, %v681, 0.0
        %v842 = vadd.f32 %v840, %v841
        %v843 = vrot.slane %v842, 4
        %v844 = vadd.f32 %v842, %v843
        %v845 = vrot.slane %v844, 2
        %v846 = vadd.f32 %v844, %v845
        %v847 = vrot.slane %v846, 1
        %v848 = vadd.f32 %v846, %v847
        %v849 = vsel %vm599, %v684, 0.0
        %v850 = vsel %vm599, %v687, 0.0
        %v851 = vadd.f32 %v849, %v850
        %v852 = vrot.slane %v851, 4
        %v853 = vadd.f32 %v851, %v852
        %v854 = vrot.slane %v853, 2
        %v855 = vadd.f32 %v853, %v854
        %v856 = vrot.slane %v855, 1
        %v857 = vadd.f32 %v855, %v856
        %v858 = vsel %vm599, %v690, 0.0
        %v859 = vsel %vm599, %v693, 0.0
        %v860 = vadd.f32 %v858, %v859
        %v861 = vrot.slane %v860, 4
        %v862 = vadd.f32 %v860, %v861
        %v863 = vrot.slane %v862, 2
        %v864 = vadd.f32 %v862, %v863
        %v865 = vrot.slane %v864, 1
        %v866 = vadd.f32 %v864, %v865
        %v867 = vsel %vm599, %v696, 0.0
        %v868 = vsel %vm599, %v699, 0.0
        %v869 = vadd.f32 %v867, %v868
        %v870 = vrot.slane %v869, 4
        %v871 = vadd.f32 %v869, %v870
        %v872 = vrot.slane %v871, 2
        %v873 = vadd.f32 %v871, %v872
        %v874 = vrot.slane %v873, 1
        %v875 = vadd.f32 %v873, %v874
        %v876 = vsel %vm599, %v702, 0.0
        %v877 = vsel %vm599, %v705, 0.0
        %v878 = vadd.f32 %v876, %v877
        %v879 = vrot.slane %v878, 4
        %v880 = vadd.f32 %v878, %v879
        %v881 = vrot.slane %v880, 2
        %v882 = vadd.f32 %v880, %v881
        %v883 = vrot.slane %v882, 1
        %v884 = vadd.f32 %v882, %v883
        %v885 = vsel %vm599, %v708, 0.0
        %v886 = vsel %vm599, %v711, 0.0
        %v887 = vadd.f32 %v885, %v886
        %v888 = vrot.slane %v887, 4
        %v889 = vadd.f32 %v887, %v888
        %v890 = vrot.slane %v889, 2
        %v891 = vadd.f32 %v889, %v890
        %v892 = vrot.slane %v891, 1
        %v893 = vadd.f32 %v891, %v892
        %v894 = vrcp.pop 16.0
        %v895 = vmul.f32 16.0, %v894
        %v896 = vsub.f32 1.0, %v895
        %v897 = vmul.f32 %v894, %v896
        %v898 = vadd.f32 %v894, %v897
        %vm899 = vweird.f32 %v894
        %v900 = vsel %vm899, %v894, %v898
        %v901 = vmul.f32 %v830, %v900
        %v902 = vmul.f32 %v839, %v900
        %v903 = vmul.f32 %v848, %v900
        %v904 = vmul.f32 %v857, %v900
        %v905 = vmul.f32 %v866, %v900
        %v906 = vmul.f32 %v875, %v900
        %v907 = vmul.f32 %v884, %v900
        %v908 = vmul.f32 %v893, %v900
        %v909 = vld [vmem:[#allocation8] sm:$0x1]
        %v910 = vadd.f32 %v901, %v909
        %v911 = vadd.f32 %v902, %v909
        %v912 = vadd.f32 %v903, %v909
        %v913 = vadd.f32 %v904, %v909
        %v914 = vadd.f32 %v905, %v909
        %v915 = vadd.f32 %v906, %v909
        %v916 = vadd.f32 %v907, %v909
        %v917 = vadd.f32 %v908, %v909
        %v918 = vsel %vm599, %v739, 0.0
        %v919 = vsel %vm599, %v742, 0.0
        %v920 = vadd.f32 %v918, %v919
        %v921 = vrot.slane %v920, 4
        %v922 = vadd.f32 %v920, %v921
        %v923 = vrot.slane %v922, 2
        %v924 = vadd.f32 %v922, %v923
        %v925 = vrot.slane %v924, 1
        %v926 = vadd.f32 %v924, %v925
        %v927 = vsel %vm599, %v745, 0.0
        %v928 = vsel %vm599, %v748, 0.0
        %v929 = vadd.f32 %v927, %v928
        %v930 = vrot.slane %v929, 4
        %v931 = vadd.f32 %v929, %v930
        %v932 = vrot.slane %v931, 2
        %v933 = vadd.f32 %v931, %v932
        %v934 = vrot.slane %v933, 1
        %v935 = vadd.f32 %v933, %v934
        %v936 = vsel %vm599, %v751, 0.0
        %v937 = vsel %vm599, %v754, 0.0
        %v938 = vadd.f32 %v936, %v937
        %v939 = vrot.slane %v938, 4
        %v940 = vadd.f32 %v938, %v939
        %v941 = vrot.slane %v940, 2
        %v942 = vadd.f32 %v940, %v941
        %v943 = vrot.slane %v942, 1
        %v944 = vadd.f32 %v942, %v943
        %v945 = vsel %vm599, %v757, 0.0
        %v946 = vsel %vm599, %v760, 0.0
        %v947 = vadd.f32 %v945, %v946
        %v948 = vrot.slane %v947, 4
        %v949 = vadd.f32 %v947, %v948
        %v950 = vrot.slane %v949, 2
        %v951 = vadd.f32 %v949, %v950
        %v952 = vrot.slane %v951, 1
        %v953 = vadd.f32 %v951, %v952
        %v954 = vsel %vm599, %v763, 0.0
        %v955 = vsel %vm599, %v766, 0.0
        %v956 = vadd.f32 %v954, %v955
        %v957 = vrot.slane %v956, 4
        %v958 = vadd.f32 %v956, %v957
        %v959 = vrot.slane %v958, 2
        %v960 = vadd.f32 %v958, %v959
        %v961 = vrot.slane %v960, 1
        %v962 = vadd.f32 %v960, %v961
        %v963 = vsel %vm599, %v769, 0.0
        %v964 = vsel %vm599, %v772, 0.0
        %v965 = vadd.f32 %v963, %v964
        %v966 = vrot.slane %v965, 4
        %v967 = vadd.f32 %v965, %v966
        %v968 = vrot.slane %v967, 2
        %v969 = vadd.f32 %v967, %v968
        %v970 = vrot.slane %v969, 1
        %v971 = vadd.f32 %v969, %v970
        %v972 = vsel %vm599, %v775, 0.0
        %v973 = vsel %vm599, %v778, 0.0
        %v974 = vadd.f32 %v972, %v973
        %v975 = vrot.slane %v974, 4
        %v976 = vadd.f32 %v974, %v975
        %v977 = vrot.slane %v976, 2
        %v978 = vadd.f32 %v976, %v977
        %v979 = vrot.slane %v978, 1
        %v980 = vadd.f32 %v978, %v979
        %v981 = vsel %vm599, %v781, 0.0
        %v982 = vsel %vm599, %v784, 0.0
        %v983 = vadd.f32 %v981, %v982
        %v984 = vrot.slane %v983, 4
        %v985 = vadd.f32 %v983, %v984
        %v986 = vrot.slane %v985, 2
        %v987 = vadd.f32 %v985, %v986
        %v988 = vrot.slane %v987, 1
        %v989 = vadd.f32 %v987, %v988
        %v990 = vmul.f32 %v926, %v900
        %v991 = vmul.f32 %v935, %v900
        %v992 = vmul.f32 %v944, %v900
        %v993 = vmul.f32 %v953, %v900
        %v994 = vmul.f32 %v962, %v900
        %v995 = vmul.f32 %v971, %v900
        %v996 = vmul.f32 %v980, %v900
        %v997 = vmul.f32 %v989, %v900
        %v998 = vld [vmem:[#allocation10] sm:$0x1]
        %v999 = vadd.f32 %v990, %v998
        %v1000 = vadd.f32 %v991, %v998
        %v1001 = vadd.f32 %v992, %v998
        %v1002 = vadd.f32 %v993, %v998
        %v1003 = vadd.f32 %v994, %v998
        %v1004 = vadd.f32 %v995, %v998
        %v1005 = vadd.f32 %v996, %v998
        %v1006 = vadd.f32 %v997, %v998
        %v1007 = vsel %vm599, %v575, 0.0
        %v1008 = vsel %vm599, %v576, 0.0
        %v1009 = vadd.f32 %v1007, %v1008
        %v1010 = vrot.slane %v1009, 4
        %v1011 = vadd.f32 %v1009, %v1010
        %v1012 = vrot.slane %v1011, 2
        %v1013 = vadd.f32 %v1011, %v1012
        %v1014 = vrot.slane %v1013, 1
        %v1015 = vadd.f32 %v1013, %v1014
        %v1016 = vsel %vm599, %v577, 0.0
        %v1017 = vsel %vm599, %v578, 0.0
        %v1018 = vadd.f32 %v1016, %v1017
        %v1019 = vrot.slane %v1018, 4
        %v1020 = vadd.f32 %v1018, %v1019
        %v1021 = vrot.slane %v1020, 2
        %v1022 = vadd.f32 %v1020, %v1021
        %v1023 = vrot.slane %v1022, 1
        %v1024 = vadd.f32 %v1022, %v1023
        %v1025 = vsel %vm599, %v579, 0.0
        %v1026 = vsel %vm599, %v580, 0.0
        %v1027 = vadd.f32 %v1025, %v1026
        %v1028 = vrot.slane %v1027, 4
        %v1029 = vadd.f32 %v1027, %v1028
        %v1030 = vrot.slane %v1029, 2
        %v1031 = vadd.f32 %v1029, %v1030
        %v1032 = vrot.slane %v1031, 1
        %v1033 = vadd.f32 %v1031, %v1032
        %v1034 = vsel %vm599, %v581, 0.0
        %v1035 = vsel %vm599, %v582, 0.0
        %v1036 = vadd.f32 %v1034, %v1035
        %v1037 = vrot.slane %v1036, 4
        %v1038 = vadd.f32 %v1036, %v1037
        %v1039 = vrot.slane %v1038, 2
        %v1040 = vadd.f32 %v1038, %v1039
        %v1041 = vrot.slane %v1040, 1
        %v1042 = vadd.f32 %v1040, %v1041
        %v1043 = vsel %vm599, %v583, 0.0
        %v1044 = vsel %vm599, %v584, 0.0
        %v1045 = vadd.f32 %v1043, %v1044
        %v1046 = vrot.slane %v1045, 4
        %v1047 = vadd.f32 %v1045, %v1046
        %v1048 = vrot.slane %v1047, 2
        %v1049 = vadd.f32 %v1047, %v1048
        %v1050 = vrot.slane %v1049, 1
        %v1051 = vadd.f32 %v1049, %v1050
        %v1052 = vsel %vm599, %v585, 0.0
        %v1053 = vsel %vm599, %v586, 0.0
        %v1054 = vadd.f32 %v1052, %v1053
        %v1055 = vrot.slane %v1054, 4
        %v1056 = vadd.f32 %v1054, %v1055
        %v1057 = vrot.slane %v1056, 2
        %v1058 = vadd.f32 %v1056, %v1057
        %v1059 = vrot.slane %v1058, 1
        %v1060 = vadd.f32 %v1058, %v1059
        %v1061 = vsel %vm599, %v587, 0.0
        %v1062 = vsel %vm599, %v588, 0.0
        %v1063 = vadd.f32 %v1061, %v1062
        %v1064 = vrot.slane %v1063, 4
        %v1065 = vadd.f32 %v1063, %v1064
        %v1066 = vrot.slane %v1065, 2
        %v1067 = vadd.f32 %v1065, %v1066
        %v1068 = vrot.slane %v1067, 1
        %v1069 = vadd.f32 %v1067, %v1068
        %v1070 = vsel %vm599, %v589, 0.0
        %v1071 = vsel %vm599, %v590, 0.0
        %v1072 = vadd.f32 %v1070, %v1071
        %v1073 = vrot.slane %v1072, 4
        %v1074 = vadd.f32 %v1072, %v1073
        %v1075 = vrot.slane %v1074, 2
        %v1076 = vadd.f32 %v1074, %v1075
        %v1077 = vrot.slane %v1076, 1
        %v1078 = vadd.f32 %v1076, %v1077
        %v1079 = vmul.f32 %v1015, %v900
        %v1080 = vmul.f32 %v1024, %v900
        %v1081 = vmul.f32 %v1033, %v900
        %v1082 = vmul.f32 %v1042, %v900
        %v1083 = vmul.f32 %v1051, %v900
        %v1084 = vmul.f32 %v1060, %v900
        %v1085 = vmul.f32 %v1069, %v900
        %v1086 = vmul.f32 %v1078, %v900
        %v1087 = vld [vmem:[%s8] sm:$0xff]
        %v1088 = vld [vmem:[%s8 + $0x8] sm:$0xff]
        %v1089 = vld [vmem:[%s8 + $0x10] sm:$0xff]
        %v1090 = vld [vmem:[%s8 + $0x18] sm:$0xff]
        %v1091 = vld [vmem:[%s8 + $0x20] sm:$0xff]
        %v1092 = vld [vmem:[%s8 + $0x28] sm:$0xff]
        %v1093 = vld [vmem:[%s8 + $0x30] sm:$0xff]
        %v1094 = vld [vmem:[%s8 + $0x38] sm:$0xff]
        %v1095 = vld [vmem:[%s3] sm:$0x1]
        %v1097 = vperm.slane %v1095, 0
        %vm1107 = vcmask 1041409
        %v1108 = vsel %vm1107, %v1080, %v1079
        %vm1109 = vcmask 1042434
        %v1110 = vsel %vm1109, %v1081, %v1108
        %vm1111 = vcmask 1043459
        %v1112 = vsel %vm1111, %v1082, %v1110
        %vm1113 = vcmask 1044484
        %v1114 = vsel %vm1113, %v1083, %v1112
        %vm1115 = vcmask 1045509
        %v1116 = vsel %vm1115, %v1084, %v1114
        %vm1117 = vcmask 1046534
        %v1118 = vsel %vm1117, %v1085, %v1116
        %vm1119 = vcmask 1047559
        %v1120 = vsel %vm1119, %v1086, %v1118
        %v1121 = vsel %vm599, %v1120, 0
        %1123 = vmatpush.msra.mxu0 0.0
        %1124 = vmatpush.msra.mxu0 0.0
        %1125 = vmatpush.msra.mxu0 0.0
        %1126 = vmatpush.msra.mxu0 0.0
        %1127 = vmatpush.msra.mxu0 0.0
        %1128 = vmatpush.msra.mxu0 0.0
        %1129 = vmatpush.msra.mxu0 0.0
        %1130 = vmatpush.msra.mxu0 0.0
        %1131 = vmatpush.msra.mxu0 %v1094
        %1132 = vmatpush.msra.mxu0 %v1093
        %1133 = vmatpush.msra.mxu0 %v1092
        %1134 = vmatpush.msra.mxu0 %v1091
        %1135 = vmatpush.msra.mxu0 %v1090
        %1136 = vmatpush.msra.mxu0 %v1089
        %1137 = vmatpush.msra.mxu0 %v1088
        %1138 = vmatpush.msra.mxu0 %v1087
        %1139 = vmatmul.f32.gmra.mxu0 %v1121
        %v1140 = vpop.f32.mrf.mxu0
        %v1141 = vadd.f32 %v1097, %v1140
        %1142 = vdwg.mxu0
        %v1143 = vld [vmem:[%s6] sm:$0xff]
        %v1144 = vld [vmem:[%s6 + $0x8] sm:$0xff]
        %v1145 = vld [vmem:[%s6 + $0x10] sm:$0xff]
        %v1146 = vld [vmem:[%s6 + $0x18] sm:$0xff]
        %v1147 = vld [vmem:[%s6 + $0x20] sm:$0xff]
        %v1148 = vld [vmem:[%s6 + $0x28] sm:$0xff]
        %v1149 = vld [vmem:[%s6 + $0x30] sm:$0xff]
        %v1150 = vld [vmem:[%s6 + $0x38] sm:$0xff]
        %v1152 = vrot.slane %v1141, 1
        %v1153 = vrot.slane %v1141, 2
        %v1154 = vrot.slane %v1141, 3
        %v1155 = vrot.slane %v1141, 4
        %v1156 = vrot.slane %v1141, 5
        %v1157 = vrot.slane %v1141, 6
        %v1158 = vrot.slane %v1141, 7
        %v1166 = vperm.slane %v1141, 0
        %v1167 = vperm.slane %v1152, 0
        %v1168 = vperm.slane %v1153, 0
        %v1169 = vperm.slane %v1154, 0
        %v1170 = vperm.slane %v1155, 0
        %v1171 = vperm.slane %v1156, 0
        %v1172 = vperm.slane %v1157, 0
        %v1173 = vperm.slane %v1158, 0
        %v1182 = vmul.f32 %v788, %v1166
        %v1183 = vmul.f32 %v789, %v1166
        %v1184 = vmul.f32 %v790, %v1167
        %v1185 = vmul.f32 %v791, %v1167
        %v1186 = vmul.f32 %v792, %v1168
        %v1187 = vmul.f32 %v793, %v1168
        %v1188 = vmul.f32 %v794, %v1169
        %v1189 = vmul.f32 %v795, %v1169
        %v1190 = vmul.f32 %v796, %v1170
        %v1191 = vmul.f32 %v797, %v1170
        %v1192 = vmul.f32 %v798, %v1171
        %v1193 = vmul.f32 %v799, %v1171
        %v1194 = vmul.f32 %v800, %v1172
        %v1195 = vmul.f32 %v801, %v1172
        %v1196 = vmul.f32 %v802, %v1173
        %v1197 = vmul.f32 %v803, %v1173
        %v1199 = vsel %vm599, %v1182, 0
        %v1202 = vsel %vm599, %v1183, 0
        %v1205 = vsel %vm599, %v1184, 0
        %v1208 = vsel %vm599, %v1185, 0
        %v1211 = vsel %vm599, %v1186, 0
        %v1214 = vsel %vm599, %v1187, 0
        %v1217 = vsel %vm599, %v1188, 0
        %v1220 = vsel %vm599, %v1189, 0
        %v1223 = vsel %vm599, %v1190, 0
        %v1226 = vsel %vm599, %v1191, 0
        %v1229 = vsel %vm599, %v1192, 0
        %v1232 = vsel %vm599, %v1193, 0
        %v1235 = vsel %vm599, %v1194, 0
        %v1238 = vsel %vm599, %v1195, 0
        %v1241 = vsel %vm599, %v1196, 0
        %v1244 = vsel %vm599, %v1197, 0
        %1246 = vmatpush.msra.mxu0 0.0
        %1247 = vmatpush.msra.mxu0 0.0
        %1248 = vmatpush.msra.mxu0 0.0
        %1249 = vmatpush.msra.mxu0 0.0
        %1250 = vmatpush.msra.mxu0 0.0
        %1251 = vmatpush.msra.mxu0 0.0
        %1252 = vmatpush.msra.mxu0 0.0
        %1253 = vmatpush.msra.mxu0 0.0
        %1254 = vmatpush.msra.mxu0 %v1150
        %1255 = vmatpush.msra.mxu0 %v1149
        %1256 = vmatpush.msra.mxu0 %v1148
        %1257 = vmatpush.msra.mxu0 %v1147
        %1258 = vmatpush.msra.mxu0 %v1146
        %1259 = vmatpush.msra.mxu0 %v1145
        %1260 = vmatpush.msra.mxu0 %v1144
        %1261 = vmatpush.msra.mxu0 %v1143
        %1262 = vmatmul.f32.gmra.mxu0 %v1199
        %v1263 = vpop.f32.mrf.mxu0
        %v1264 = vadd.f32 0.0, %v1263
        %1265 = vmatmul.f32.gmra.mxu0 %v1202
        %v1266 = vpop.f32.mrf.mxu0
        %v1267 = vadd.f32 0.0, %v1266
        %1268 = vmatmul.f32.gmra.mxu0 %v1205
        %v1269 = vpop.f32.mrf.mxu0
        %v1270 = vadd.f32 0.0, %v1269
        %1271 = vmatmul.f32.gmra.mxu0 %v1208
        %v1272 = vpop.f32.mrf.mxu0
        %v1273 = vadd.f32 0.0, %v1272
        %1274 = vmatmul.f32.gmra.mxu0 %v1211
        %v1275 = vpop.f32.mrf.mxu0
        %v1276 = vadd.f32 0.0, %v1275
        %1277 = vmatmul.f32.gmra.mxu0 %v1214
        %v1278 = vpop.f32.mrf.mxu0
        %v1279 = vadd.f32 0.0, %v1278
        %1280 = vmatmul.f32.gmra.mxu0 %v1217
        %v1281 = vpop.f32.mrf.mxu0
        %v1282 = vadd.f32 0.0, %v1281
        %1283 = vmatmul.f32.gmra.mxu0 %v1220
        %v1284 = vpop.f32.mrf.mxu0
        %v1285 = vadd.f32 0.0, %v1284
        %1286 = vmatmul.f32.gmra.mxu0 %v1223
        %v1287 = vpop.f32.mrf.mxu0
        %v1288 = vadd.f32 0.0, %v1287
        %1289 = vmatmul.f32.gmra.mxu0 %v1226
        %v1290 = vpop.f32.mrf.mxu0
        %v1291 = vadd.f32 0.0, %v1290
        %1292 = vmatmul.f32.gmra.mxu0 %v1229
        %v1293 = vpop.f32.mrf.mxu0
        %v1294 = vadd.f32 0.0, %v1293
        %1295 = vmatmul.f32.gmra.mxu0 %v1232
        %v1296 = vpop.f32.mrf.mxu0
        %v1297 = vadd.f32 0.0, %v1296
        %1298 = vmatmul.f32.gmra.mxu0 %v1235
        %v1299 = vpop.f32.mrf.mxu0
        %v1300 = vadd.f32 0.0, %v1299
        %1301 = vmatmul.f32.gmra.mxu0 %v1238
        %v1302 = vpop.f32.mrf.mxu0
        %v1303 = vadd.f32 0.0, %v1302
        %1304 = vmatmul.f32.gmra.mxu0 %v1241
        %v1305 = vpop.f32.mrf.mxu0
        %v1306 = vadd.f32 0.0, %v1305
        %1307 = vmatmul.f32.gmra.mxu0 %v1244
        %v1308 = vpop.f32.mrf.mxu0
        %v1309 = vadd.f32 0.0, %v1308
        %1310 = vdwg.mxu0
        %v1311 = vmul.f32 %v910, %v1141
        %v1312 = vmul.f32 %v911, %v1152
        %v1313 = vmul.f32 %v912, %v1153
        %v1314 = vmul.f32 %v913, %v1154
        %v1315 = vmul.f32 %v914, %v1155
        %v1316 = vmul.f32 %v915, %v1156
        %v1317 = vmul.f32 %v916, %v1157
        %v1318 = vmul.f32 %v917, %v1158
        %v1327 = vrot.slane %v1312, 7
        %v1328 = vsel %vm1107, %v1327, %v1311
        %v1329 = vrot.slane %v1313, 6
        %v1330 = vsel %vm1109, %v1329, %v1328
        %v1331 = vrot.slane %v1314, 5
        %v1332 = vsel %vm1111, %v1331, %v1330
        %v1333 = vrot.slane %v1315, 4
        %v1334 = vsel %vm1113, %v1333, %v1332
        %v1335 = vrot.slane %v1316, 3
        %v1336 = vsel %vm1115, %v1335, %v1334
        %v1337 = vrot.slane %v1317, 2
        %v1338 = vsel %vm1117, %v1337, %v1336
        %v1339 = vrot.slane %v1318, 1
        %v1340 = vsel %vm1119, %v1339, %v1338
        %v1341 = vsel %vm599, %v1340, 0
        %1343 = vmatpush.msra.mxu0 0.0
        %1344 = vmatpush.msra.mxu0 0.0
        %1345 = vmatpush.msra.mxu0 0.0
        %1346 = vmatpush.msra.mxu0 0.0
        %1347 = vmatpush.msra.mxu0 0.0
        %1348 = vmatpush.msra.mxu0 0.0
        %1349 = vmatpush.msra.mxu0 0.0
        %1350 = vmatpush.msra.mxu0 0.0
        %1351 = vmatpush.msra.mxu0 %v1150
        %1352 = vmatpush.msra.mxu0 %v1149
        %1353 = vmatpush.msra.mxu0 %v1148
        %1354 = vmatpush.msra.mxu0 %v1147
        %1355 = vmatpush.msra.mxu0 %v1146
        %1356 = vmatpush.msra.mxu0 %v1145
        %1357 = vmatpush.msra.mxu0 %v1144
        %1358 = vmatpush.msra.mxu0 %v1143
        %1359 = vmatmul.f32.gmra.mxu0 %v1341
        %v1360 = vpop.f32.mrf.mxu0
        %v1361 = vadd.f32 0.0, %v1360
        %1362 = vdwg.mxu0
        %v1364 = vrot.slane %v1361, 1
        %v1365 = vrot.slane %v1361, 2
        %v1366 = vrot.slane %v1361, 3
        %v1367 = vrot.slane %v1361, 4
        %v1368 = vrot.slane %v1361, 5
        %v1369 = vrot.slane %v1361, 6
        %v1370 = vrot.slane %v1361, 7
        %vm1378 = vcmask 31744
        %v1379 = vsel %vm1378, %v1264, -inf
        %v1380 = vsel %vm1378, %v1267, -inf
        %v1381 = vmax.f32 %v1379, %v1380
        %v1382 = vrot.slane %v1381, 4
        %v1383 = vmax.f32 %v1381, %v1382
        %v1384 = vrot.slane %v1383, 2
        %v1385 = vmax.f32 %v1383, %v1384
        %v1386 = vrot.slane %v1385, 1
        %v1387 = vmax.f32 %v1385, %v1386
        %v1388 = vsel %vm1378, %v1270, -inf
        %v1389 = vsel %vm1378, %v1273, -inf
        %v1390 = vmax.f32 %v1388, %v1389
        %v1391 = vrot.slane %v1390, 4
        %v1392 = vmax.f32 %v1390, %v1391
        %v1393 = vrot.slane %v1392, 2
        %v1394 = vmax.f32 %v1392, %v1393
        %v1395 = vrot.slane %v1394, 1
        %v1396 = vmax.f32 %v1394, %v1395
        %v1397 = vsel %vm1378, %v1276, -inf
        %v1398 = vsel %vm1378, %v1279, -inf
        %v1399 = vmax.f32 %v1397, %v1398
        %v1400 = vrot.slane %v1399, 4
        %v1401 = vmax.f32 %v1399, %v1400
        %v1402 = vrot.slane %v1401, 2
        %v1403 = vmax.f32 %v1401, %v1402
        %v1404 = vrot.slane %v1403, 1
        %v1405 = vmax.f32 %v1403, %v1404
        %v1406 = vsel %vm1378, %v1282, -inf
        %v1407 = vsel %vm1378, %v1285, -inf
        %v1408 = vmax.f32 %v1406, %v1407
        %v1409 = vrot.slane %v1408, 4
        %v1410 = vmax.f32 %v1408, %v1409
        %v1411 = vrot.slane %v1410, 2
        %v1412 = vmax.f32 %v1410, %v1411
        %v1413 = vrot.slane %v1412, 1
        %v1414 = vmax.f32 %v1412, %v1413
        %v1415 = vsel %vm1378, %v1288, -inf
        %v1416 = vsel %vm1378, %v1291, -inf
        %v1417 = vmax.f32 %v1415, %v1416
        %v1418 = vrot.slane %v1417, 4
        %v1419 = vmax.f32 %v1417, %v1418
        %v1420 = vrot.slane %v1419, 2
        %v1421 = vmax.f32 %v1419, %v1420
        %v1422 = vrot.slane %v1421, 1
        %v1423 = vmax.f32 %v1421, %v1422
        %v1424 = vsel %vm1378, %v1294, -inf
        %v1425 = vsel %vm1378, %v1297, -inf
        %v1426 = vmax.f32 %v1424, %v1425
        %v1427 = vrot.slane %v1426, 4
        %v1428 = vmax.f32 %v1426, %v1427
        %v1429 = vrot.slane %v1428, 2
        %v1430 = vmax.f32 %v1428, %v1429
        %v1431 = vrot.slane %v1430, 1
        %v1432 = vmax.f32 %v1430, %v1431
        %v1433 = vsel %vm1378, %v1300, -inf
        %v1434 = vsel %vm1378, %v1303, -inf
        %v1435 = vmax.f32 %v1433, %v1434
        %v1436 = vrot.slane %v1435, 4
        %v1437 = vmax.f32 %v1435, %v1436
        %v1438 = vrot.slane %v1437, 2
        %v1439 = vmax.f32 %v1437, %v1438
        %v1440 = vrot.slane %v1439, 1
        %v1441 = vmax.f32 %v1439, %v1440
        %v1442 = vsel %vm1378, %v1306, -inf
        %v1443 = vsel %vm1378, %v1309, -inf
        %v1444 = vmax.f32 %v1442, %v1443
        %v1445 = vrot.slane %v1444, 4
        %v1446 = vmax.f32 %v1444, %v1445
        %v1447 = vrot.slane %v1446, 2
        %v1448 = vmax.f32 %v1446, %v1447
        %v1449 = vrot.slane %v1448, 1
        %v1450 = vmax.f32 %v1448, %v1449
        %v1451 = vmax.f32 %v1387, %v1361
        %v1452 = vmax.f32 %v1396, %v1364
        %v1453 = vmax.f32 %v1405, %v1365
        %v1454 = vmax.f32 %v1414, %v1366
        %v1455 = vmax.f32 %v1423, %v1367
        %v1456 = vmax.f32 %v1432, %v1368
        %v1457 = vmax.f32 %v1441, %v1369
        %v1458 = vmax.f32 %v1450, %v1370
        %v1459 = vperm.slane %v1451, 0
        %v1460 = vperm.slane %v1452, 0
        %v1461 = vperm.slane %v1453, 0
        %v1462 = vperm.slane %v1454, 0
        %v1463 = vperm.slane %v1455, 0
        %v1464 = vperm.slane %v1456, 0
        %v1465 = vperm.slane %v1457, 0
        %v1466 = vperm.slane %v1458, 0
        %v1467 = vsub.f32 %v1264, %v1459
        %v1468 = vsub.f32 %v1267, %v1459
        %v1469 = vsub.f32 %v1270, %v1460
        %v1470 = vsub.f32 %v1273, %v1460
        %v1471 = vsub.f32 %v1276, %v1461
        %v1472 = vsub.f32 %v1279, %v1461
        %v1473 = vsub.f32 %v1282, %v1462
        %v1474 = vsub.f32 %v1285, %v1462
        %v1475 = vsub.f32 %v1288, %v1463
        %v1476 = vsub.f32 %v1291, %v1463
        %v1477 = vsub.f32 %v1294, %v1464
        %v1478 = vsub.f32 %v1297, %v1464
        %v1479 = vsub.f32 %v1300, %v1465
        %v1480 = vsub.f32 %v1303, %v1465
        %v1481 = vsub.f32 %v1306, %v1466
        %v1482 = vsub.f32 %v1309, %v1466
        %v1483 = vmul.f32 %v1467, 1.442695
        %v1484 = vpow.pop %v1483
        %v1485 = vmul.f32 %v1468, 1.442695
        %v1486 = vpow.pop %v1485
        %v1487 = vmul.f32 %v1469, 1.442695
        %v1488 = vpow.pop %v1487
        %v1489 = vmul.f32 %v1470, 1.442695
        %v1490 = vpow.pop %v1489
        %v1491 = vmul.f32 %v1471, 1.442695
        %v1492 = vpow.pop %v1491
        %v1493 = vmul.f32 %v1472, 1.442695
        %v1494 = vpow.pop %v1493
        %v1495 = vmul.f32 %v1473, 1.442695
        %v1496 = vpow.pop %v1495
        %v1497 = vmul.f32 %v1474, 1.442695
        %v1498 = vpow.pop %v1497
        %v1499 = vmul.f32 %v1475, 1.442695
        %v1500 = vpow.pop %v1499
        %v1501 = vmul.f32 %v1476, 1.442695
        %v1502 = vpow.pop %v1501
        %v1503 = vmul.f32 %v1477, 1.442695
        %v1504 = vpow.pop %v1503
        %v1505 = vmul.f32 %v1478, 1.442695
        %v1506 = vpow.pop %v1505
        %v1507 = vmul.f32 %v1479, 1.442695
        %v1508 = vpow.pop %v1507
        %v1509 = vmul.f32 %v1480, 1.442695
        %v1510 = vpow.pop %v1509
        %v1511 = vmul.f32 %v1481, 1.442695
        %v1512 = vpow.pop %v1511
        %v1513 = vmul.f32 %v1482, 1.442695
        %v1514 = vpow.pop %v1513
        %v1515 = vsub.f32 %v1361, %v1451
        %v1516 = vsub.f32 %v1364, %v1452
        %v1517 = vsub.f32 %v1365, %v1453
        %v1518 = vsub.f32 %v1366, %v1454
        %v1519 = vsub.f32 %v1367, %v1455
        %v1520 = vsub.f32 %v1368, %v1456
        %v1521 = vsub.f32 %v1369, %v1457
        %v1522 = vsub.f32 %v1370, %v1458
        %v1523 = vmul.f32 %v1515, 1.442695
        %v1524 = vpow.pop %v1523
        %v1525 = vmul.f32 %v1516, 1.442695
        %v1526 = vpow.pop %v1525
        %v1527 = vmul.f32 %v1517, 1.442695
        %v1528 = vpow.pop %v1527
        %v1529 = vmul.f32 %v1518, 1.442695
        %v1530 = vpow.pop %v1529
        %v1531 = vmul.f32 %v1519, 1.442695
        %v1532 = vpow.pop %v1531
        %v1533 = vmul.f32 %v1520, 1.442695
        %v1534 = vpow.pop %v1533
        %v1535 = vmul.f32 %v1521, 1.442695
        %v1536 = vpow.pop %v1535
        %v1537 = vmul.f32 %v1522, 1.442695
        %v1538 = vpow.pop %v1537
        %v1539 = vsel %vm1378, %v1484, 0.0
        %v1540 = vsel %vm1378, %v1486, 0.0
        %v1541 = vadd.f32 %v1539, %v1540
        %v1542 = vrot.slane %v1541, 4
        %v1543 = vadd.f32 %v1541, %v1542
        %v1544 = vrot.slane %v1543, 2
        %v1545 = vadd.f32 %v1543, %v1544
        %v1546 = vrot.slane %v1545, 1
        %v1547 = vadd.f32 %v1545, %v1546
        %v1548 = vsel %vm1378, %v1488, 0.0
        %v1549 = vsel %vm1378, %v1490, 0.0
        %v1550 = vadd.f32 %v1548, %v1549
        %v1551 = vrot.slane %v1550, 4
        %v1552 = vadd.f32 %v1550, %v1551
        %v1553 = vrot.slane %v1552, 2
        %v1554 = vadd.f32 %v1552, %v1553
        %v1555 = vrot.slane %v1554, 1
        %v1556 = vadd.f32 %v1554, %v1555
        %v1557 = vsel %vm1378, %v1492, 0.0
        %v1558 = vsel %vm1378, %v1494, 0.0
        %v1559 = vadd.f32 %v1557, %v1558
        %v1560 = vrot.slane %v1559, 4
        %v1561 = vadd.f32 %v1559, %v1560
        %v1562 = vrot.slane %v1561, 2
        %v1563 = vadd.f32 %v1561, %v1562
        %v1564 = vrot.slane %v1563, 1
        %v1565 = vadd.f32 %v1563, %v1564
        %v1566 = vsel %vm1378, %v1496, 0.0
        %v1567 = vsel %vm1378, %v1498, 0.0
        %v1568 = vadd.f32 %v1566, %v1567
        %v1569 = vrot.slane %v1568, 4
        %v1570 = vadd.f32 %v1568, %v1569
        %v1571 = vrot.slane %v1570, 2
        %v1572 = vadd.f32 %v1570, %v1571
        %v1573 = vrot.slane %v1572, 1
        %v1574 = vadd.f32 %v1572, %v1573
        %v1575 = vsel %vm1378, %v1500, 0.0
        %v1576 = vsel %vm1378, %v1502, 0.0
        %v1577 = vadd.f32 %v1575, %v1576
        %v1578 = vrot.slane %v1577, 4
        %v1579 = vadd.f32 %v1577, %v1578
        %v1580 = vrot.slane %v1579, 2
        %v1581 = vadd.f32 %v1579, %v1580
        %v1582 = vrot.slane %v1581, 1
        %v1583 = vadd.f32 %v1581, %v1582
        %v1584 = vsel %vm1378, %v1504, 0.0
        %v1585 = vsel %vm1378, %v1506, 0.0
        %v1586 = vadd.f32 %v1584, %v1585
        %v1587 = vrot.slane %v1586, 4
        %v1588 = vadd.f32 %v1586, %v1587
        %v1589 = vrot.slane %v1588, 2
        %v1590 = vadd.f32 %v1588, %v1589
        %v1591 = vrot.slane %v1590, 1
        %v1592 = vadd.f32 %v1590, %v1591
        %v1593 = vsel %vm1378, %v1508, 0.0
        %v1594 = vsel %vm1378, %v1510, 0.0
        %v1595 = vadd.f32 %v1593, %v1594
        %v1596 = vrot.slane %v1595, 4
        %v1597 = vadd.f32 %v1595, %v1596
        %v1598 = vrot.slane %v1597, 2
        %v1599 = vadd.f32 %v1597, %v1598
        %v1600 = vrot.slane %v1599, 1
        %v1601 = vadd.f32 %v1599, %v1600
        %v1602 = vsel %vm1378, %v1512, 0.0
        %v1603 = vsel %vm1378, %v1514, 0.0
        %v1604 = vadd.f32 %v1602, %v1603
        %v1605 = vrot.slane %v1604, 4
        %v1606 = vadd.f32 %v1604, %v1605
        %v1607 = vrot.slane %v1606, 2
        %v1608 = vadd.f32 %v1606, %v1607
        %v1609 = vrot.slane %v1608, 1
        %v1610 = vadd.f32 %v1608, %v1609
        %v1611 = vadd.f32 %v1547, %v1524
        %v1612 = vadd.f32 %v1556, %v1526
        %v1613 = vadd.f32 %v1565, %v1528
        %v1614 = vadd.f32 %v1574, %v1530
        %v1615 = vadd.f32 %v1583, %v1532
        %v1616 = vadd.f32 %v1592, %v1534
        %v1617 = vadd.f32 %v1601, %v1536
        %v1618 = vadd.f32 %v1610, %v1538
        %v1619 = vrcp.pop %v1611
        %v1620 = vrcp.pop %v1612
        %v1621 = vrcp.pop %v1613
        %v1622 = vrcp.pop %v1614
        %v1623 = vrcp.pop %v1615
        %v1624 = vrcp.pop %v1616
        %v1625 = vrcp.pop %v1617
        %v1626 = vrcp.pop %v1618
        %v1627 = vperm.slane %v1619, 0
        %v1628 = vperm.slane %v1620, 0
        %v1629 = vperm.slane %v1621, 0
        %v1630 = vperm.slane %v1622, 0
        %v1631 = vperm.slane %v1623, 0
        %v1632 = vperm.slane %v1624, 0
        %v1633 = vperm.slane %v1625, 0
        %v1634 = vperm.slane %v1626, 0
        %v1635 = vmul.f32 %v1484, %v1627
        %v1636 = vmul.f32 %v1486, %v1627
        %v1637 = vmul.f32 %v1488, %v1628
        %v1638 = vmul.f32 %v1490, %v1628
        %v1639 = vmul.f32 %v1492, %v1629
        %v1640 = vmul.f32 %v1494, %v1629
        %v1641 = vmul.f32 %v1496, %v1630
        %v1642 = vmul.f32 %v1498, %v1630
        %v1643 = vmul.f32 %v1500, %v1631
        %v1644 = vmul.f32 %v1502, %v1631
        %v1645 = vmul.f32 %v1504, %v1632
        %v1646 = vmul.f32 %v1506, %v1632
        %v1647 = vmul.f32 %v1508, %v1633
        %v1648 = vmul.f32 %v1510, %v1633
        %v1649 = vmul.f32 %v1512, %v1634
        %v1650 = vmul.f32 %v1514, %v1634
        %v1651 = vmul.f32 %v1524, %v1619
        %v1652 = vmul.f32 %v1526, %v1620
        %v1653 = vmul.f32 %v1528, %v1621
        %v1654 = vmul.f32 %v1530, %v1622
        %v1655 = vmul.f32 %v1532, %v1623
        %v1656 = vmul.f32 %v1534, %v1624
        %v1657 = vmul.f32 %v1536, %v1625
        %v1658 = vmul.f32 %v1538, %v1626
        %v1659 = vld [vmem:[%s7] sm:$0xf]
        %v1661 = vsel %vm1378, %v1635, 0
        %v1664 = vsel %vm1378, %v1636, 0
        %v1667 = vsel %vm1378, %v1637, 0
        %v1670 = vsel %vm1378, %v1638, 0
        %v1673 = vsel %vm1378, %v1639, 0
        %v1676 = vsel %vm1378, %v1640, 0
        %v1679 = vsel %vm1378, %v1641, 0
        %v1682 = vsel %vm1378, %v1642, 0
        %v1685 = vsel %vm1378, %v1643, 0
        %v1688 = vsel %vm1378, %v1644, 0
        %v1691 = vsel %vm1378, %v1645, 0
        %v1694 = vsel %vm1378, %v1646, 0
        %v1697 = vsel %vm1378, %v1647, 0
        %v1700 = vsel %vm1378, %v1648, 0
        %v1703 = vsel %vm1378, %v1649, 0
        %v1706 = vsel %vm1378, %v1650, 0
        %vm1708 = vcmask 1043456
        %v1710 = vsel %vm1708, %v1659, 0
        %1712 = vmatpush.msra.mxu0 0.0
        %1713 = vmatpush.msra.mxu0 0.0
        %1714 = vmatpush.msra.mxu0 0.0
        %1715 = vmatpush.msra.mxu0 0.0
        %1716 = vmatpush.msra.mxu0 0.0
        %1717 = vmatpush.msra.mxu0 0.0
        %1718 = vmatpush.msra.mxu0 0.0
        %1719 = vmatpush.msra.mxu0 0.0
        %1720 = vmatpush.msra.mxu0 0.0
        %1721 = vmatpush.msra.mxu0 0.0
        %1722 = vmatpush.msra.mxu0 0.0
        %1723 = vmatpush.msra.mxu0 0.0
        %1724 = vmatpush.msra.mxu0 0.0
        %1725 = vmatpush.msra.mxu0 0.0
        %1726 = vmatpush.msra.mxu0 0.0
        %1727 = vmatpush.msra.mxu0 %v1710
        %1728 = vmatmul.f32.gmra.mxu0 %v1661
        %v1729 = vpop.f32.mrf.mxu0
        %v1730 = vadd.f32 0.0, %v1729
        %1731 = vmatmul.f32.gmra.mxu0 %v1664
        %v1732 = vpop.f32.mrf.mxu0
        %v1733 = vadd.f32 0.0, %v1732
        %1734 = vmatmul.f32.gmra.mxu0 %v1667
        %v1735 = vpop.f32.mrf.mxu0
        %v1736 = vadd.f32 0.0, %v1735
        %1737 = vmatmul.f32.gmra.mxu0 %v1670
        %v1738 = vpop.f32.mrf.mxu0
        %v1739 = vadd.f32 0.0, %v1738
        %1740 = vmatmul.f32.gmra.mxu0 %v1673
        %v1741 = vpop.f32.mrf.mxu0
        %v1742 = vadd.f32 0.0, %v1741
        %1743 = vmatmul.f32.gmra.mxu0 %v1676
        %v1744 = vpop.f32.mrf.mxu0
        %v1745 = vadd.f32 0.0, %v1744
        %1746 = vmatmul.f32.gmra.mxu0 %v1679
        %v1747 = vpop.f32.mrf.mxu0
        %v1748 = vadd.f32 0.0, %v1747
        %1749 = vmatmul.f32.gmra.mxu0 %v1682
        %v1750 = vpop.f32.mrf.mxu0
        %v1751 = vadd.f32 0.0, %v1750
        %1752 = vmatmul.f32.gmra.mxu0 %v1685
        %v1753 = vpop.f32.mrf.mxu0
        %v1754 = vadd.f32 0.0, %v1753
        %1755 = vmatmul.f32.gmra.mxu0 %v1688
        %v1756 = vpop.f32.mrf.mxu0
        %v1757 = vadd.f32 0.0, %v1756
        %1758 = vmatmul.f32.gmra.mxu0 %v1691
        %v1759 = vpop.f32.mrf.mxu0
        %v1760 = vadd.f32 0.0, %v1759
        %1761 = vmatmul.f32.gmra.mxu0 %v1694
        %v1762 = vpop.f32.mrf.mxu0
        %v1763 = vadd.f32 0.0, %v1762
        %1764 = vmatmul.f32.gmra.mxu0 %v1697
        %v1765 = vpop.f32.mrf.mxu0
        %v1766 = vadd.f32 0.0, %v1765
        %1767 = vmatmul.f32.gmra.mxu0 %v1700
        %v1768 = vpop.f32.mrf.mxu0
        %v1769 = vadd.f32 0.0, %v1768
        %1770 = vmatmul.f32.gmra.mxu0 %v1703
        %v1771 = vpop.f32.mrf.mxu0
        %v1772 = vadd.f32 0.0, %v1771
        %1773 = vmatmul.f32.gmra.mxu0 %v1706
        %v1774 = vpop.f32.mrf.mxu0
        %v1775 = vadd.f32 0.0, %v1774
        %1776 = vdwg.mxu0
        %1785 = vst [vmem:[#allocation1] ss:$9 sm:$0xff] %v1651
        %s1786 = scalar_lea.vmem [#allocation1], 1
        %1787 = vst [vmem:[%s1786] ss:$9 sm:$0xff] %v1652
        %s1788 = scalar_lea.vmem [#allocation1], 2
        %1789 = vst [vmem:[%s1788] ss:$9 sm:$0xff] %v1653
        %s1790 = scalar_lea.vmem [#allocation1], 3
        %1791 = vst [vmem:[%s1790] ss:$9 sm:$0xff] %v1654
        %s1792 = scalar_lea.vmem [#allocation1], 4
        %1793 = vst [vmem:[%s1792] ss:$9 sm:$0xff] %v1655
        %s1794 = scalar_lea.vmem [#allocation1], 5
        %1795 = vst [vmem:[%s1794] ss:$9 sm:$0xff] %v1656
        %s1796 = scalar_lea.vmem [#allocation1], 6
        %1797 = vst [vmem:[%s1796] ss:$9 sm:$0xff] %v1657
        %s1798 = scalar_lea.vmem [#allocation1], 7
        %1799 = vst [vmem:[%s1798] ss:$9 sm:$0xff] %v1658
        %v1800 = vld [vmem:[#allocation1] sm:$0xff]
        %v1801 = vsel %vm1378, %v1800, 0
        %1803 = vmatpush.msra.mxu0 0.0
        %1804 = vmatpush.msra.mxu0 0.0
        %1805 = vmatpush.msra.mxu0 0.0
        %1806 = vmatpush.msra.mxu0 0.0
        %1807 = vmatpush.msra.mxu0 0.0
        %1808 = vmatpush.msra.mxu0 0.0
        %1809 = vmatpush.msra.mxu0 0.0
        %1810 = vmatpush.msra.mxu0 0.0
        %1811 = vmatpush.msra.mxu0 0.0
        %1812 = vmatpush.msra.mxu0 0.0
        %1813 = vmatpush.msra.mxu0 0.0
        %1814 = vmatpush.msra.mxu0 0.0
        %1815 = vmatpush.msra.mxu0 0.0
        %1816 = vmatpush.msra.mxu0 0.0
        %1817 = vmatpush.msra.mxu0 0.0
        %1818 = vmatpush.msra.mxu0 %v1710
        %1819 = vmatmul.f32.gmra.mxu0 %v1801
        %v1820 = vpop.f32.mrf.mxu0
        %v1821 = vadd.f32 0.0, %v1820
        %1822 = vdwg.mxu0
        %v1823 = vmul.f32 %v1730, %v806
        %v1824 = vmul.f32 %v1733, %v807
        %v1825 = vmul.f32 %v1736, %v808
        %v1826 = vmul.f32 %v1739, %v809
        %v1827 = vmul.f32 %v1742, %v810
        %v1828 = vmul.f32 %v1745, %v811
        %v1829 = vmul.f32 %v1748, %v812
        %v1830 = vmul.f32 %v1751, %v813
        %v1831 = vmul.f32 %v1754, %v814
        %v1832 = vmul.f32 %v1757, %v815
        %v1833 = vmul.f32 %v1760, %v816
        %v1834 = vmul.f32 %v1763, %v817
        %v1835 = vmul.f32 %v1766, %v818
        %v1836 = vmul.f32 %v1769, %v819
        %v1837 = vmul.f32 %v1772, %v820
        %v1838 = vmul.f32 %v1775, %v821
        %v1839 = vsel %vm599, %v1823, 0.0
        %v1840 = vsel %vm599, %v1824, 0.0
        %v1841 = vadd.f32 %v1839, %v1840
        %v1842 = vrot.slane %v1841, 4
        %v1843 = vadd.f32 %v1841, %v1842
        %v1844 = vrot.slane %v1843, 2
        %v1845 = vadd.f32 %v1843, %v1844
        %v1846 = vrot.slane %v1845, 1
        %v1847 = vadd.f32 %v1845, %v1846
        %v1848 = vsel %vm599, %v1825, 0.0
        %v1849 = vsel %vm599, %v1826, 0.0
        %v1850 = vadd.f32 %v1848, %v1849
        %v1851 = vrot.slane %v1850, 4
        %v1852 = vadd.f32 %v1850, %v1851
        %v1853 = vrot.slane %v1852, 2
        %v1854 = vadd.f32 %v1852, %v1853
        %v1855 = vrot.slane %v1854, 1
        %v1856 = vadd.f32 %v1854, %v1855
        %v1857 = vsel %vm599, %v1827, 0.0
        %v1858 = vsel %vm599, %v1828, 0.0
        %v1859 = vadd.f32 %v1857, %v1858
        %v1860 = vrot.slane %v1859, 4
        %v1861 = vadd.f32 %v1859, %v1860
        %v1862 = vrot.slane %v1861, 2
        %v1863 = vadd.f32 %v1861, %v1862
        %v1864 = vrot.slane %v1863, 1
        %v1865 = vadd.f32 %v1863, %v1864
        %v1866 = vsel %vm599, %v1829, 0.0
        %v1867 = vsel %vm599, %v1830, 0.0
        %v1868 = vadd.f32 %v1866, %v1867
        %v1869 = vrot.slane %v1868, 4
        %v1870 = vadd.f32 %v1868, %v1869
        %v1871 = vrot.slane %v1870, 2
        %v1872 = vadd.f32 %v1870, %v1871
        %v1873 = vrot.slane %v1872, 1
        %v1874 = vadd.f32 %v1872, %v1873
        %v1875 = vsel %vm599, %v1831, 0.0
        %v1876 = vsel %vm599, %v1832, 0.0
        %v1877 = vadd.f32 %v1875, %v1876
        %v1878 = vrot.slane %v1877, 4
        %v1879 = vadd.f32 %v1877, %v1878
        %v1880 = vrot.slane %v1879, 2
        %v1881 = vadd.f32 %v1879, %v1880
        %v1882 = vrot.slane %v1881, 1
        %v1883 = vadd.f32 %v1881, %v1882
        %v1884 = vsel %vm599, %v1833, 0.0
        %v1885 = vsel %vm599, %v1834, 0.0
        %v1886 = vadd.f32 %v1884, %v1885
        %v1887 = vrot.slane %v1886, 4
        %v1888 = vadd.f32 %v1886, %v1887
        %v1889 = vrot.slane %v1888, 2
        %v1890 = vadd.f32 %v1888, %v1889
        %v1891 = vrot.slane %v1890, 1
        %v1892 = vadd.f32 %v1890, %v1891
        %v1893 = vsel %vm599, %v1835, 0.0
        %v1894 = vsel %vm599, %v1836, 0.0
        %v1895 = vadd.f32 %v1893, %v1894
        %v1896 = vrot.slane %v1895, 4
        %v1897 = vadd.f32 %v1895, %v1896
        %v1898 = vrot.slane %v1897, 2
        %v1899 = vadd.f32 %v1897, %v1898
        %v1900 = vrot.slane %v1899, 1
        %v1901 = vadd.f32 %v1899, %v1900
        %v1902 = vsel %vm599, %v1837, 0.0
        %v1903 = vsel %vm599, %v1838, 0.0
        %v1904 = vadd.f32 %v1902, %v1903
        %v1905 = vrot.slane %v1904, 4
        %v1906 = vadd.f32 %v1904, %v1905
        %v1907 = vrot.slane %v1906, 2
        %v1908 = vadd.f32 %v1906, %v1907
        %v1909 = vrot.slane %v1908, 1
        %v1910 = vadd.f32 %v1908, %v1909
        %v1919 = vrot.slane %v1000, 7
        %v1920 = vsel %vm1107, %v1919, %v999
        %v1921 = vrot.slane %v1001, 6
        %v1922 = vsel %vm1109, %v1921, %v1920
        %v1923 = vrot.slane %v1002, 5
        %v1924 = vsel %vm1111, %v1923, %v1922
        %v1925 = vrot.slane %v1003, 4
        %v1926 = vsel %vm1113, %v1925, %v1924
        %v1927 = vrot.slane %v1004, 3
        %v1928 = vsel %vm1115, %v1927, %v1926
        %v1929 = vrot.slane %v1005, 2
        %v1930 = vsel %vm1117, %v1929, %v1928
        %v1931 = vrot.slane %v1006, 1
        %v1932 = vsel %vm1119, %v1931, %v1930
        %v1934 = vmul.f32 %v1821, %v1932
        %v1936 = vrot.slane %v1934, 1
        %v1937 = vrot.slane %v1934, 2
        %v1938 = vrot.slane %v1934, 3
        %v1939 = vrot.slane %v1934, 4
        %v1940 = vrot.slane %v1934, 5
        %v1941 = vrot.slane %v1934, 6
        %v1942 = vrot.slane %v1934, 7
        %v1951 = vadd.f32 %v1847, %v1934
        %v1952 = vadd.f32 %v1856, %v1936
        %v1953 = vadd.f32 %v1865, %v1937
        %v1954 = vadd.f32 %v1874, %v1938
        %v1955 = vadd.f32 %v1883, %v1939
        %v1956 = vadd.f32 %v1892, %v1940
        %v1957 = vadd.f32 %v1901, %v1941
        %v1958 = vadd.f32 %v1910, %v1942
        %v1959 = vld [vmem:[#allocation14] sm:$0xff]
        %v1960 = vld [vmem:[#allocation14 + $0x8] sm:$0xff]
        %v1961 = vld [vmem:[#allocation14 + $0x10] sm:$0xff]
        %v1962 = vld [vmem:[#allocation14 + $0x18] sm:$0xff]
        %v1963 = vld [vmem:[#allocation14 + $0x20] sm:$0xff]
        %v1964 = vld [vmem:[#allocation14 + $0x28] sm:$0xff]
        %v1965 = vld [vmem:[#allocation14 + $0x30] sm:$0xff]
        %v1966 = vld [vmem:[#allocation14 + $0x38] sm:$0xff]
        %v1967 = vld [vmem:[%s12] sm:$0x1]
        %v1969 = vperm.slane %v1967, 0
        %v1979 = vrot.slane %v1952, 7
        %v1980 = vsel %vm1107, %v1979, %v1951
        %v1981 = vrot.slane %v1953, 6
        %v1982 = vsel %vm1109, %v1981, %v1980
        %v1983 = vrot.slane %v1954, 5
        %v1984 = vsel %vm1111, %v1983, %v1982
        %v1985 = vrot.slane %v1955, 4
        %v1986 = vsel %vm1113, %v1985, %v1984
        %v1987 = vrot.slane %v1956, 3
        %v1988 = vsel %vm1115, %v1987, %v1986
        %v1989 = vrot.slane %v1957, 2
        %v1990 = vsel %vm1117, %v1989, %v1988
        %v1991 = vrot.slane %v1958, 1
        %v1992 = vsel %vm1119, %v1991, %v1990
        %v1993 = vsel %vm599, %v1992, 0
        %1995 = vmatpush.msra.mxu0 0.0
        %1996 = vmatpush.msra.mxu0 0.0
        %1997 = vmatpush.msra.mxu0 0.0
        %1998 = vmatpush.msra.mxu0 0.0
        %1999 = vmatpush.msra.mxu0 0.0
        %2000 = vmatpush.msra.mxu0 0.0
        %2001 = vmatpush.msra.mxu0 0.0
        %2002 = vmatpush.msra.mxu0 0.0
        %2003 = vmatpush.msra.mxu0 %v1966
        %2004 = vmatpush.msra.mxu0 %v1965
        %2005 = vmatpush.msra.mxu0 %v1964
        %2006 = vmatpush.msra.mxu0 %v1963
        %2007 = vmatpush.msra.mxu0 %v1962
        %2008 = vmatpush.msra.mxu0 %v1961
        %2009 = vmatpush.msra.mxu0 %v1960
        %2010 = vmatpush.msra.mxu0 %v1959
        %2011 = vmatmul.f32.gmra.mxu0 %v1993
        %v2012 = vpop.f32.mrf.mxu0
        %v2013 = vadd.f32 %v1969, %v2012
        %2014 = vdwg.mxu0
        %2015 = vst [vmem:[%s573] sm:$0xff] %v2013
        %s2016 = sand.u32 %s320, 1
        %s2017 = scalar_lea.sflag [#allocation4], %s2016
        %s2018 = sand.u32 %s320, 1
        %s2019 = smul.addr %s2018, 8
        %s2020 = scalar_lea.vmem [#allocation16], %s2019
        // Predicated region
        $region105: #{tpu_custom_call.1} parent=71 // pred_check
          %p2021 = pneg %p330
        $region106: #{tpu_custom_call.1} parent=71 // pred_check_branch
          %2023 = sbr.rel (%p2021) target = $region108
        $region107: #{tpu_custom_call.1} parent=71 // pred_region
          %2025 = vsyncadd %s2017, 0
          %s2026 = smul.addr %s34, 8
          %s2027 = scalar_lea.hbm %s13, %s2026
          %s2029 = sshll.u32 %s2020, 4
          %s2030 = int_to_ptr.vmem [resolvable:$true] %s2029
          %s2031 = sshll.u32 %s2027, 4
          %s2032 = int_to_ptr.hbm [resolvable:$true] %s2031
          %2034 = dma.vmem_to_hbm [thread:$0]  %s2030, 128, %s2032, %s2017
        $region108: #{tpu_custom_call.1} parent=71 // pred_fallthru
          _
      $region72: #{tpu_custom_call.1} parent=5 // pred_fallthru
        _
      %p2035 = scmp.le.s32.totalorder 2, %s29
      // Predicated region
      $region109: #{tpu_custom_call.1} parent=5 // pred_check
        %p2036 = pneg %p2035
      $region110: #{tpu_custom_call.1} parent=5 // pred_check_branch
        %2038 = sbr.rel (%p2036) target = $region112
      $region111: #{tpu_custom_call.1} parent=5 // pred_region
        %s2039 = ssub.s32 %s29, 2
        // Predicated region
        $region113: #{tpu_custom_call.1} parent=111 // pred_check
          %p2040 = pneg %p336
        $region114: #{tpu_custom_call.1} parent=111 // pred_check_branch
          %2042 = sbr.rel (%p2040) target = $region116
        $region115: #{tpu_custom_call.1} parent=111 // pred_region
          %s2043 = sand.u32 %s321, 1
          %s2044 = scalar_lea.sflag [#allocation4], %s2043
          %s2045 = sand.u32 %s321, 1
          %s2046 = smul.addr %s2045, 8
          %s2047 = scalar_lea.vmem [#allocation16], %s2046
          %2049 = dma.done %s2044, 128
        $region116: #{tpu_custom_call.1} parent=111 // pred_fallthru
          _
      $region112: #{tpu_custom_call.1} parent=5 // pred_fallthru
        _
    $region6: #{tpu_custom_call.1} parent=1 // loop_footer
      %s33 = sadd.s32 1, %s29
    $region7: #{tpu_custom_call.1} parent=1 // loop_footer_branch
      %28 = sbr.rel target = $region3
    $region8: #{tpu_custom_call.1} parent=1 // loop_exit
      _
    %2050 = vsyncpa [#allocation3], 1
    %s2051 = scalar_lea.sflag [#allocation3], 1
    %2052 = vsyncpa %s2051, 1
    %2053 = vsyncpa [#allocation6], 1
    %2054 = vsyncpa [#allocation9], 1
    %2055 = vsyncpa [#allocation12], 1
    %2056 = vsyncpa [#allocation15], 1
    %2057 = vsyncpa [#allocation4], 1
    %s2058 = scalar_lea.sflag [#allocation4], 1
    %2059 = vsyncpa %s2058, 1

</llo_original>
